<compile_context>
chip_gen: v5e
topology: v5e:2x2
jax: 0.10.0
libtpu: 0.0.40
codegen_flags: <defaults>
</compile_context>

<pallas_src>
import functools
import math

import jax
import jax.numpy as jnp
from jax.experimental import pallas as pl
from jax.experimental.pallas import tpu as pltpu


# ----------------------------------------------------------------------------
# Fused kernel: layer-1 recurrence -> batched layer-2 input projection ->
# layer-2 recurrence -> concat-attention epilogue.  grid=(1,); everything VMEM.
# Gate order follows PyTorch nn.LSTM: [i, f, g, o].
# ----------------------------------------------------------------------------
def fused_lstm_attn_kernel(gx1_ref, w_hh1_ref, w_ih2_ref, w_hh2_ref, b2_ref,
                           w_attn_ref, b_attn_ref, u_ref, sv_ref, av_ref,
                           out_ref, h1_sc, h2_sc, gx2_sc):
    T, B, _ = gx1_ref.shape
    H = w_hh1_ref.shape[0]

    sv = sv_ref[...]            # (1, 4H) pre/post tanh scale per gate block
    av = av_ref[...]            # (1, 4H) post offset per gate block
    w_hh1 = w_hh1_ref[...]
    w_hh2 = w_hh2_ref[...]

    def gate_math(gates, c):
        # One full-width EUP tanh over (B, 4H); sigmoid(x) = 0.5*tanh(0.5x) + 0.5 is
        # realized with the sv/av per-column vectors (g gate gets scale 1 / offset 0).
        act = jnp.tanh(gates * sv) * sv + av              # (B, 4H)
        i = act[:, 0:H]
        f = act[:, H:2 * H]
        g = act[:, 2 * H:3 * H]
        o = act[:, 3 * H:4 * H]
        c_new = f * c + i * g
        h_new = o * jnp.tanh(c_new)
        return h_new, c_new

    zero = jnp.zeros((B, H), jnp.float32)

    # ---- layer 1: only the recurrent matmul is per-step (input gates precomputed). ----
    def step1(t, carry):
        h, c = carry
        gates = gx1_ref[t] + jnp.dot(h, w_hh1, preferred_element_type=jnp.float32)
        h, c = gate_math(gates, c)
        h1_sc[t] = h
        return (h, c)

    _ = jax.lax.fori_loop(0, T, step1, (zero, zero), unroll=True)

    # ---- layer-2 input projection: batched over the whole sequence (one matmul),
    #      bias folded in here (off the serial loop). ----
    gx2_sc[...] = (jnp.einsum("tbh,hk->tbk", h1_sc[...], w_ih2_ref[...],
                              preferred_element_type=jnp.float32) + b2_ref[...])

    # ---- layer 2 recurrence. ----
    def step2(t, carry):
        h, c = carry
        gates = gx2_sc[t] + jnp.dot(h, w_hh2, preferred_element_type=jnp.float32)
        h, c = gate_math(gates, c)
        h2_sc[t] = h
        return (h, c)

    _ = jax.lax.fori_loop(0, T, step2, (zero, zero), unroll=True)

    # ---- concat-attention epilogue (softmax over time). ----
    rnn = h2_sc[...]                                               # (T, B, H)
    laten = jnp.tanh(jnp.einsum("tbh,hk->tbk", rnn, w_attn_ref[...],
                                preferred_element_type=jnp.float32) + b_attn_ref[...])
    logits = jnp.sum(laten * u_ref[...], axis=-1, keepdims=True)   # (T, B, 1)
    m = jnp.max(logits, axis=0, keepdims=True)
    e = jnp.exp(logits - m)
    scores = e / jnp.sum(e, axis=0, keepdims=True)                 # softmax over T
    att = jnp.sum(rnn * scores, axis=0)                            # (B, H)

    out_ref[0] = h2_sc[T - 1]                                      # last hidden state
    out_ref[1] = att


# ----------------------------------------------------------------------------
# Full forward: mirrors LSTM.forward (eval mode), batch-first (B, T, D) input.
# ----------------------------------------------------------------------------
@functools.partial(jax.jit, static_argnames=())
def lstm_model_forward(x, params):
    layers = params["layers"]
    assert len(layers) == 2, "fused kernel is specialized to num_layers=2"
    (w_ih1, w_hh1, b1), (w_ih2, w_hh2, b2) = layers

    B, T, D = x.shape
    H = w_hh1.shape[0]

    x_tm = jnp.transpose(x, (1, 0, 2))                             # (T, B, D) time-major

    # Hoisted layer-1 input projection: one batched matmul over all T*B rows, bias folded.
    gx1 = (jnp.einsum("tbd,dk->tbk", x_tm, w_ih1,
                      preferred_element_type=jnp.float32) + b1)    # (T, B, 4H)

    # per-gate-column scale / offset for sigmoid-via-tanh (gate order [i, f, g, o]).
    ones = jnp.ones((H,), jnp.float32)
    sv = jnp.concatenate([0.5 * ones, 0.5 * ones, ones, 0.5 * ones]).reshape(1, 4 * H)
    av = jnp.concatenate([0.5 * ones, 0.5 * ones, 0.0 * ones, 0.5 * ones]).reshape(1, 4 * H)

    out2 = pl.pallas_call(
        fused_lstm_attn_kernel,
        out_shape=jax.ShapeDtypeStruct((2, B, H), jnp.float32),
        grid_spec=pltpu.PrefetchScalarGridSpec(
            num_scalar_prefetch=0,
            grid=(1,),
            in_specs=[
                pl.BlockSpec((T, B, 4 * H), lambda i: (0, 0, 0)),   # gx1
                pl.BlockSpec((H, 4 * H), lambda i: (0, 0)),         # w_hh1
                pl.BlockSpec((H, 4 * H), lambda i: (0, 0)),         # w_ih2
                pl.BlockSpec((H, 4 * H), lambda i: (0, 0)),         # w_hh2
                pl.BlockSpec((1, 4 * H), lambda i: (0, 0)),         # b2
                pl.BlockSpec((H, H), lambda i: (0, 0)),             # W (attn)
                pl.BlockSpec((1, H), lambda i: (0, 0)),             # bW
                pl.BlockSpec((1, H), lambda i: (0, 0)),             # u
                pl.BlockSpec((1, 4 * H), lambda i: (0, 0)),         # sv
                pl.BlockSpec((1, 4 * H), lambda i: (0, 0)),         # av
            ],
            out_specs=pl.BlockSpec((2, B, H), lambda i: (0, 0, 0)),
            scratch_shapes=[
                pltpu.VMEM((T, B, H), jnp.float32),       # layer-1 hidden sequence
                pltpu.VMEM((T, B, H), jnp.float32),       # layer-2 hidden sequence
                pltpu.VMEM((T, B, 4 * H), jnp.float32),   # layer-2 input gates
            ],
        ),
        compiler_params=pltpu.CompilerParams(dimension_semantics=("arbitrary",)),
    )(gx1, w_hh1, w_ih2, w_hh2, b2, params["W"], params["bW"], params["u"], sv, av)

    # lane-dense (2, B, H) kernel output -> (B, 2H) concat in the wrapper (plain XLA).
    return jnp.concatenate([out2[0], out2[1]], axis=-1)


# ----------------------------------------------------------------------------
# Deterministic parameter init (shapes from nn.LSTM / nn.Linear in __init__)
# ----------------------------------------------------------------------------
def init_params(key, input_size, hidden_size, num_layers):
    stdv = 1.0 / math.sqrt(hidden_size)
    layers = []
    d_in = input_size
    for _ in range(num_layers):
        key, k1, k2, k3 = jax.random.split(key, 4)
        w_ih = jax.random.uniform(k1, (d_in, 4 * hidden_size), jnp.float32, -stdv, stdv)
        w_hh = jax.random.uniform(k2, (hidden_size, 4 * hidden_size), jnp.float32, -stdv, stdv)
        b = jax.random.uniform(k3, (1, 4 * hidden_size), jnp.float32, -stdv, stdv)
        layers.append((w_ih, w_hh, b))
        d_in = hidden_size
    key, k1, k2, k3 = jax.random.split(key, 4)
    W = jax.random.uniform(k1, (hidden_size, hidden_size), jnp.float32, -stdv, stdv)
    bW = jax.random.uniform(k2, (1, hidden_size), jnp.float32, -stdv, stdv)
    u = jax.random.uniform(k3, (1, hidden_size), jnp.float32, -stdv, stdv)
    return {"layers": layers, "W": W, "bW": bW, "u": u}


# ----------------------------------------------------------------------------
# Pure-JAX reference (lax.scan) for verification
# ----------------------------------------------------------------------------
def reference_forward(x, params):
    h_seq = jnp.transpose(x, (1, 0, 2))                  # (T, B, D)
    B = x.shape[0]
    for (w_ih, w_hh, b) in params["layers"]:
        H = w_hh.shape[0]

        def step(carry, x_t):
            h, c = carry
            gates = x_t @ w_ih + h @ w_hh + b
            i = jax.nn.sigmoid(gates[:, 0 * H:1 * H])
            f = jax.nn.sigmoid(gates[:, 1 * H:2 * H])
            g = jnp.tanh(gates[:, 2 * H:3 * H])
            o = jax.nn.sigmoid(gates[:, 3 * H:4 * H])
            c = f * c + i * g
            h = o * jnp.tanh(c)
            return (h, c), h

        init = (jnp.zeros((B, H), jnp.float32), jnp.zeros((B, H), jnp.float32))
        _, h_seq = jax.lax.scan(step, init, h_seq)       # (T, B, H)

    rnn_out = jnp.transpose(h_seq, (1, 0, 2))            # (B, T, H)
    last_out = rnn_out[:, -1]
    laten = jnp.tanh(rnn_out @ params["W"] + params["bW"])
    logits = jnp.sum(laten * params["u"], axis=-1, keepdims=True)   # (B, T, 1)
    scores = jax.nn.softmax(logits, axis=1)
    att_out = jnp.sum(rnn_out * scores, axis=1)
    return jnp.concatenate([last_out, att_out], axis=1)


if __name__ == "__main__":
    B, T, D, H, L = 2, 8, 16, 64, 2

    key = jax.random.PRNGKey(0)
    kx, kp = jax.random.split(key)
    x = jax.random.normal(kx, (B, T, D), jnp.float32)
    params = init_params(kp, D, H, L)

    out = lstm_model_forward(x, params)
    out = jax.block_until_ready(out)

    ref = reference_forward(x, params)
    assert out.shape == (B, 2 * H), out.shape
    err = float(jnp.max(jnp.abs(out - ref)))
    assert jnp.allclose(out, ref, atol=2e-3, rtol=2e-3), err

    print("KERNEL_OK")
</pallas_src>

<mosaic_0001>
module attributes {stable_mosaic.version = 11 : i64} {
  func.func @fused_lstm_attn_kernel(%arg0: i32, %arg1: memref<8x2x256xf32, #tpu.memory_space<vmem>>, %arg2: memref<64x256xf32, #tpu.memory_space<vmem>>, %arg3: memref<64x256xf32, #tpu.memory_space<vmem>>, %arg4: memref<64x256xf32, #tpu.memory_space<vmem>>, %arg5: memref<1x256xf32, #tpu.memory_space<vmem>>, %arg6: memref<64x64xf32, #tpu.memory_space<vmem>>, %arg7: memref<1x64xf32, #tpu.memory_space<vmem>>, %arg8: memref<1x64xf32, #tpu.memory_space<vmem>>, %arg9: memref<1x256xf32, #tpu.memory_space<vmem>>, %arg10: memref<1x256xf32, #tpu.memory_space<vmem>>, %arg11: memref<2x2x64xf32, #tpu.memory_space<vmem>>, %arg12: memref<8x2x64xf32, #tpu.memory_space<vmem>>, %arg13: memref<8x2x64xf32, #tpu.memory_space<vmem>>, %arg14: memref<8x2x256xf32, #tpu.memory_space<vmem>>) attributes {dimension_semantics = [#tpu.dimension_semantics<arbitrary>], iteration_bounds = array<i64: 1>, scalar_prefetch = 0 : i64, scratch_operands = 3 : i64, tpu.core_type = #tpu.core_type<tc>, window_params = [{pipeline_mode = #tpu.pipeline_mode<synchronous>, transform_indices = @transform_0, window_bounds = array<i64: 8, 2, 256>}, {pipeline_mode = #tpu.pipeline_mode<synchronous>, transform_indices = @transform_1, window_bounds = array<i64: 64, 256>}, {pipeline_mode = #tpu.pipeline_mode<synchronous>, transform_indices = @transform_2, window_bounds = array<i64: 64, 256>}, {pipeline_mode = #tpu.pipeline_mode<synchronous>, transform_indices = @transform_3, window_bounds = array<i64: 64, 256>}, {pipeline_mode = #tpu.pipeline_mode<synchronous>, transform_indices = @transform_4, window_bounds = array<i64: 1, 256>}, {pipeline_mode = #tpu.pipeline_mode<synchronous>, transform_indices = @transform_5, window_bounds = array<i64: 64, 64>}, {pipeline_mode = #tpu.pipeline_mode<synchronous>, transform_indices = @transform_6, window_bounds = array<i64: 1, 64>}, {pipeline_mode = #tpu.pipeline_mode<synchronous>, transform_indices = @transform_7, window_bounds = array<i64: 1, 64>}, {pipeline_mode = #tpu.pipeline_mode<synchronous>, transform_indices = @transform_8, window_bounds = array<i64: 1, 256>}, {pipeline_mode = #tpu.pipeline_mode<synchronous>, transform_indices = @transform_9, window_bounds = array<i64: 1, 256>}, {pipeline_mode = #tpu.pipeline_mode<synchronous>, transform_indices = @transform_10, window_bounds = array<i64: 2, 2, 64>}]} {
    %c0 = arith.constant 0 : index
    %c0_0 = arith.constant 0 : index
    %0 = vector.load %arg9[%c0, %c0_0] : memref<1x256xf32, #tpu.memory_space<vmem>>, vector<1x256xf32>
    %c0_1 = arith.constant 0 : index
    %c0_2 = arith.constant 0 : index
    %1 = vector.load %arg10[%c0_1, %c0_2] : memref<1x256xf32, #tpu.memory_space<vmem>>, vector<1x256xf32>
    %c0_3 = arith.constant 0 : index
    %c0_4 = arith.constant 0 : index
    %2 = vector.load %arg2[%c0_3, %c0_4] : memref<64x256xf32, #tpu.memory_space<vmem>>, vector<64x256xf32>
    %c0_5 = arith.constant 0 : index
    %c0_6 = arith.constant 0 : index
    %3 = vector.load %arg4[%c0_5, %c0_6] : memref<64x256xf32, #tpu.memory_space<vmem>>, vector<64x256xf32>
    %cst = arith.constant 0.000000e+00 : f32
    %4 = vector.broadcast %cst : f32 to vector<2x64xf32>
    %c0_i32 = arith.constant 0 : i32
    %5 = arith.index_cast %c0_i32 : i32 to index
    %c0_7 = arith.constant 0 : index
    %c0_8 = arith.constant 0 : index
    %6 = vector.load %arg1[%5, %c0_7, %c0_8] : memref<8x2x256xf32, #tpu.memory_space<vmem>>, vector<1x2x256xf32>
    %7 = vector.shape_cast %6 : vector<1x2x256xf32> to vector<2x256xf32>
    %cst_9 = arith.constant dense<0.000000e+00> : vector<2x256xf32>
    %8 = tpu.matmul %4, %2, %cst_9 {dimension_numbers = #tpu.dot_dimension_numbers<[1], [0], [0], [1], [0, 0, 1, 1], [], []>} : vector<2x64xf32>, vector<64x256xf32>, vector<2x256xf32> -> vector<2x256xf32>
    %9 = arith.addf %7, %8 : vector<2x256xf32>
    %10 = vector.broadcast %0 : vector<1x256xf32> to vector<2x256xf32>
    %11 = arith.mulf %9, %10 : vector<2x256xf32>
    %12 = math.tanh %11 : vector<2x256xf32>
    %13 = vector.broadcast %0 : vector<1x256xf32> to vector<2x256xf32>
    %14 = arith.mulf %12, %13 : vector<2x256xf32>
    %15 = vector.broadcast %1 : vector<1x256xf32> to vector<2x256xf32>
    %16 = arith.addf %14, %15 : vector<2x256xf32>
    %17 = vector.extract_strided_slice %16 {offsets = [0, 0], sizes = [2, 64], strides = [1, 1]} : vector<2x256xf32> to vector<2x64xf32>
    %18 = vector.extract_strided_slice %16 {offsets = [0, 64], sizes = [2, 64], strides = [1, 1]} : vector<2x256xf32> to vector<2x64xf32>
    %19 = vector.extract_strided_slice %16 {offsets = [0, 128], sizes = [2, 64], strides = [1, 1]} : vector<2x256xf32> to vector<2x64xf32>
    %20 = vector.extract_strided_slice %16 {offsets = [0, 192], sizes = [2, 64], strides = [1, 1]} : vector<2x256xf32> to vector<2x64xf32>
    %21 = arith.mulf %18, %4 : vector<2x64xf32>
    %22 = arith.mulf %17, %19 : vector<2x64xf32>
    %23 = arith.addf %21, %22 : vector<2x64xf32>
    %24 = math.tanh %23 : vector<2x64xf32>
    %25 = arith.mulf %20, %24 : vector<2x64xf32>
    %26 = arith.index_cast %c0_i32 : i32 to index
    %c0_10 = arith.constant 0 : index
    %c0_11 = arith.constant 0 : index
    %27 = vector.load %arg12[%26, %c0_10, %c0_11] : memref<8x2x64xf32, #tpu.memory_space<vmem>>, vector<1x2x64xf32>
    %28 = vector.shape_cast %27 : vector<1x2x64xf32> to vector<2x64xf32>
    %29 = vector.shape_cast %25 : vector<2x64xf32> to vector<1x2x64xf32>
    tpu.vector_store %arg12[%26, %c0_10, %c0_11], %29 {strides = array<i32>} : memref<8x2x64xf32, #tpu.memory_space<vmem>>, vector<1x2x64xf32>,
    %c1_i32 = arith.constant 1 : i32
    %30 = arith.index_cast %c1_i32 : i32 to index
    %c0_12 = arith.constant 0 : index
    %c0_13 = arith.constant 0 : index
    %31 = vector.load %arg1[%30, %c0_12, %c0_13] : memref<8x2x256xf32, #tpu.memory_space<vmem>>, vector<1x2x256xf32>
    %32 = vector.shape_cast %31 : vector<1x2x256xf32> to vector<2x256xf32>
    %cst_14 = arith.constant dense<0.000000e+00> : vector<2x256xf32>
    %33 = tpu.matmul %25, %2, %cst_14 {dimension_numbers = #tpu.dot_dimension_numbers<[1], [0], [0], [1], [0, 0, 1, 1], [], []>} : vector<2x64xf32>, vector<64x256xf32>, vector<2x256xf32> -> vector<2x256xf32>
    %34 = arith.addf %32, %33 : vector<2x256xf32>
    %35 = vector.broadcast %0 : vector<1x256xf32> to vector<2x256xf32>
    %36 = arith.mulf %34, %35 : vector<2x256xf32>
    %37 = math.tanh %36 : vector<2x256xf32>
    %38 = vector.broadcast %0 : vector<1x256xf32> to vector<2x256xf32>
    %39 = arith.mulf %37, %38 : vector<2x256xf32>
    %40 = vector.broadcast %1 : vector<1x256xf32> to vector<2x256xf32>
    %41 = arith.addf %39, %40 : vector<2x256xf32>
    %42 = vector.extract_strided_slice %41 {offsets = [0, 0], sizes = [2, 64], strides = [1, 1]} : vector<2x256xf32> to vector<2x64xf32>
    %43 = vector.extract_strided_slice %41 {offsets = [0, 64], sizes = [2, 64], strides = [1, 1]} : vector<2x256xf32> to vector<2x64xf32>
    %44 = vector.extract_strided_slice %41 {offsets = [0, 128], sizes = [2, 64], strides = [1, 1]} : vector<2x256xf32> to vector<2x64xf32>
    %45 = vector.extract_strided_slice %41 {offsets = [0, 192], sizes = [2, 64], strides = [1, 1]} : vector<2x256xf32> to vector<2x64xf32>
    %46 = arith.mulf %43, %23 : vector<2x64xf32>
    %47 = arith.mulf %42, %44 : vector<2x64xf32>
    %48 = arith.addf %46, %47 : vector<2x64xf32>
    %49 = math.tanh %48 : vector<2x64xf32>
    %50 = arith.mulf %45, %49 : vector<2x64xf32>
    %51 = arith.index_cast %c1_i32 : i32 to index
    %c0_15 = arith.constant 0 : index
    %c0_16 = arith.constant 0 : index
    %52 = vector.load %arg12[%51, %c0_15, %c0_16] : memref<8x2x64xf32, #tpu.memory_space<vmem>>, vector<1x2x64xf32>
    %53 = vector.shape_cast %52 : vector<1x2x64xf32> to vector<2x64xf32>
    %54 = vector.shape_cast %50 : vector<2x64xf32> to vector<1x2x64xf32>
    tpu.vector_store %arg12[%51, %c0_15, %c0_16], %54 {strides = array<i32>} : memref<8x2x64xf32, #tpu.memory_space<vmem>>, vector<1x2x64xf32>,
    %c2_i32 = arith.constant 2 : i32
    %55 = arith.index_cast %c2_i32 : i32 to index
    %c0_17 = arith.constant 0 : index
    %c0_18 = arith.constant 0 : index
    %56 = vector.load %arg1[%55, %c0_17, %c0_18] : memref<8x2x256xf32, #tpu.memory_space<vmem>>, vector<1x2x256xf32>
    %57 = vector.shape_cast %56 : vector<1x2x256xf32> to vector<2x256xf32>
    %cst_19 = arith.constant dense<0.000000e+00> : vector<2x256xf32>
    %58 = tpu.matmul %50, %2, %cst_19 {dimension_numbers = #tpu.dot_dimension_numbers<[1], [0], [0], [1], [0, 0, 1, 1], [], []>} : vector<2x64xf32>, vector<64x256xf32>, vector<2x256xf32> -> vector<2x256xf32>
    %59 = arith.addf %57, %58 : vector<2x256xf32>
    %60 = vector.broadcast %0 : vector<1x256xf32> to vector<2x256xf32>
    %61 = arith.mulf %59, %60 : vector<2x256xf32>
    %62 = math.tanh %61 : vector<2x256xf32>
    %63 = vector.broadcast %0 : vector<1x256xf32> to vector<2x256xf32>
    %64 = arith.mulf %62, %63 : vector<2x256xf32>
    %65 = vector.broadcast %1 : vector<1x256xf32> to vector<2x256xf32>
    %66 = arith.addf %64, %65 : vector<2x256xf32>
    %67 = vector.extract_strided_slice %66 {offsets = [0, 0], sizes = [2, 64], strides = [1, 1]} : vector<2x256xf32> to vector<2x64xf32>
    %68 = vector.extract_strided_slice %66 {offsets = [0, 64], sizes = [2, 64], strides = [1, 1]} : vector<2x256xf32> to vector<2x64xf32>
    %69 = vector.extract_strided_slice %66 {offsets = [0, 128], sizes = [2, 64], strides = [1, 1]} : vector<2x256xf32> to vector<2x64xf32>
    %70 = vector.extract_strided_slice %66 {offsets = [0, 192], sizes = [2, 64], strides = [1, 1]} : vector<2x256xf32> to vector<2x64xf32>
    %71 = arith.mulf %68, %48 : vector<2x64xf32>
    %72 = arith.mulf %67, %69 : vector<2x64xf32>
    %73 = arith.addf %71, %72 : vector<2x64xf32>
    %74 = math.tanh %73 : vector<2x64xf32>
    %75 = arith.mulf %70, %74 : vector<2x64xf32>
    %76 = arith.index_cast %c2_i32 : i32 to index
    %c0_20 = arith.constant 0 : index
    %c0_21 = arith.constant 0 : index
    %77 = vector.load %arg12[%76, %c0_20, %c0_21] : memref<8x2x64xf32, #tpu.memory_space<vmem>>, vector<1x2x64xf32>
    %78 = vector.shape_cast %77 : vector<1x2x64xf32> to vector<2x64xf32>
    %79 = vector.shape_cast %75 : vector<2x64xf32> to vector<1x2x64xf32>
    tpu.vector_store %arg12[%76, %c0_20, %c0_21], %79 {strides = array<i32>} : memref<8x2x64xf32, #tpu.memory_space<vmem>>, vector<1x2x64xf32>,
    %c3_i32 = arith.constant 3 : i32
    %80 = arith.index_cast %c3_i32 : i32 to index
    %c0_22 = arith.constant 0 : index
    %c0_23 = arith.constant 0 : index
    %81 = vector.load %arg1[%80, %c0_22, %c0_23] : memref<8x2x256xf32, #tpu.memory_space<vmem>>, vector<1x2x256xf32>
    %82 = vector.shape_cast %81 : vector<1x2x256xf32> to vector<2x256xf32>
    %cst_24 = arith.constant dense<0.000000e+00> : vector<2x256xf32>
    %83 = tpu.matmul %75, %2, %cst_24 {dimension_numbers = #tpu.dot_dimension_numbers<[1], [0], [0], [1], [0, 0, 1, 1], [], []>} : vector<2x64xf32>, vector<64x256xf32>, vector<2x256xf32> -> vector<2x256xf32>
    %84 = arith.addf %82, %83 : vector<2x256xf32>
    %85 = vector.broadcast %0 : vector<1x256xf32> to vector<2x256xf32>
    %86 = arith.mulf %84, %85 : vector<2x256xf32>
    %87 = math.tanh %86 : vector<2x256xf32>
    %88 = vector.broadcast %0 : vector<1x256xf32> to vector<2x256xf32>
    %89 = arith.mulf %87, %88 : vector<2x256xf32>
    %90 = vector.broadcast %1 : vector<1x256xf32> to vector<2x256xf32>
    %91 = arith.addf %89, %90 : vector<2x256xf32>
    %92 = vector.extract_strided_slice %91 {offsets = [0, 0], sizes = [2, 64], strides = [1, 1]} : vector<2x256xf32> to vector<2x64xf32>
    %93 = vector.extract_strided_slice %91 {offsets = [0, 64], sizes = [2, 64], strides = [1, 1]} : vector<2x256xf32> to vector<2x64xf32>
    %94 = vector.extract_strided_slice %91 {offsets = [0, 128], sizes = [2, 64], strides = [1, 1]} : vector<2x256xf32> to vector<2x64xf32>
    %95 = vector.extract_strided_slice %91 {offsets = [0, 192], sizes = [2, 64], strides = [1, 1]} : vector<2x256xf32> to vector<2x64xf32>
    %96 = arith.mulf %93, %73 : vector<2x64xf32>
    %97 = arith.mulf %92, %94 : vector<2x64xf32>
    %98 = arith.addf %96, %97 : vector<2x64xf32>
    %99 = math.tanh %98 : vector<2x64xf32>
    %100 = arith.mulf %95, %99 : vector<2x64xf32>
    %101 = arith.index_cast %c3_i32 : i32 to index
    %c0_25 = arith.constant 0 : index
    %c0_26 = arith.constant 0 : index
    %102 = vector.load %arg12[%101, %c0_25, %c0_26] : memref<8x2x64xf32, #tpu.memory_space<vmem>>, vector<1x2x64xf32>
    %103 = vector.shape_cast %102 : vector<1x2x64xf32> to vector<2x64xf32>
    %104 = vector.shape_cast %100 : vector<2x64xf32> to vector<1x2x64xf32>
    tpu.vector_store %arg12[%101, %c0_25, %c0_26], %104 {strides = array<i32>} : memref<8x2x64xf32, #tpu.memory_space<vmem>>, vector<1x2x64xf32>,
    %c4_i32 = arith.constant 4 : i32
    %105 = arith.index_cast %c4_i32 : i32 to index
    %c0_27 = arith.constant 0 : index
    %c0_28 = arith.constant 0 : index
    %106 = vector.load %arg1[%105, %c0_27, %c0_28] : memref<8x2x256xf32, #tpu.memory_space<vmem>>, vector<1x2x256xf32>
    %107 = vector.shape_cast %106 : vector<1x2x256xf32> to vector<2x256xf32>
    %cst_29 = arith.constant dense<0.000000e+00> : vector<2x256xf32>
    %108 = tpu.matmul %100, %2, %cst_29 {dimension_numbers = #tpu.dot_dimension_numbers<[1], [0], [0], [1], [0, 0, 1, 1], [], []>} : vector<2x64xf32>, vector<64x256xf32>, vector<2x256xf32> -> vector<2x256xf32>
    %109 = arith.addf %107, %108 : vector<2x256xf32>
    %110 = vector.broadcast %0 : vector<1x256xf32> to vector<2x256xf32>
    %111 = arith.mulf %109, %110 : vector<2x256xf32>
    %112 = math.tanh %111 : vector<2x256xf32>
    %113 = vector.broadcast %0 : vector<1x256xf32> to vector<2x256xf32>
    %114 = arith.mulf %112, %113 : vector<2x256xf32>
    %115 = vector.broadcast %1 : vector<1x256xf32> to vector<2x256xf32>
    %116 = arith.addf %114, %115 : vector<2x256xf32>
    %117 = vector.extract_strided_slice %116 {offsets = [0, 0], sizes = [2, 64], strides = [1, 1]} : vector<2x256xf32> to vector<2x64xf32>
    %118 = vector.extract_strided_slice %116 {offsets = [0, 64], sizes = [2, 64], strides = [1, 1]} : vector<2x256xf32> to vector<2x64xf32>
    %119 = vector.extract_strided_slice %116 {offsets = [0, 128], sizes = [2, 64], strides = [1, 1]} : vector<2x256xf32> to vector<2x64xf32>
    %120 = vector.extract_strided_slice %116 {offsets = [0, 192], sizes = [2, 64], strides = [1, 1]} : vector<2x256xf32> to vector<2x64xf32>
    %121 = arith.mulf %118, %98 : vector<2x64xf32>
    %122 = arith.mulf %117, %119 : vector<2x64xf32>
    %123 = arith.addf %121, %122 : vector<2x64xf32>
    %124 = math.tanh %123 : vector<2x64xf32>
    %125 = arith.mulf %120, %124 : vector<2x64xf32>
    %126 = arith.index_cast %c4_i32 : i32 to index
    %c0_30 = arith.constant 0 : index
    %c0_31 = arith.constant 0 : index
    %127 = vector.load %arg12[%126, %c0_30, %c0_31] : memref<8x2x64xf32, #tpu.memory_space<vmem>>, vector<1x2x64xf32>
    %128 = vector.shape_cast %127 : vector<1x2x64xf32> to vector<2x64xf32>
    %129 = vector.shape_cast %125 : vector<2x64xf32> to vector<1x2x64xf32>
    tpu.vector_store %arg12[%126, %c0_30, %c0_31], %129 {strides = array<i32>} : memref<8x2x64xf32, #tpu.memory_space<vmem>>, vector<1x2x64xf32>,
    %c5_i32 = arith.constant 5 : i32
    %130 = arith.index_cast %c5_i32 : i32 to index
    %c0_32 = arith.constant 0 : index
    %c0_33 = arith.constant 0 : index
    %131 = vector.load %arg1[%130, %c0_32, %c0_33] : memref<8x2x256xf32, #tpu.memory_space<vmem>>, vector<1x2x256xf32>
    %132 = vector.shape_cast %131 : vector<1x2x256xf32> to vector<2x256xf32>
    %cst_34 = arith.constant dense<0.000000e+00> : vector<2x256xf32>
    %133 = tpu.matmul %125, %2, %cst_34 {dimension_numbers = #tpu.dot_dimension_numbers<[1], [0], [0], [1], [0, 0, 1, 1], [], []>} : vector<2x64xf32>, vector<64x256xf32>, vector<2x256xf32> -> vector<2x256xf32>
    %134 = arith.addf %132, %133 : vector<2x256xf32>
    %135 = vector.broadcast %0 : vector<1x256xf32> to vector<2x256xf32>
    %136 = arith.mulf %134, %135 : vector<2x256xf32>
    %137 = math.tanh %136 : vector<2x256xf32>
    %138 = vector.broadcast %0 : vector<1x256xf32> to vector<2x256xf32>
    %139 = arith.mulf %137, %138 : vector<2x256xf32>
    %140 = vector.broadcast %1 : vector<1x256xf32> to vector<2x256xf32>
    %141 = arith.addf %139, %140 : vector<2x256xf32>
    %142 = vector.extract_strided_slice %141 {offsets = [0, 0], sizes = [2, 64], strides = [1, 1]} : vector<2x256xf32> to vector<2x64xf32>
    %143 = vector.extract_strided_slice %141 {offsets = [0, 64], sizes = [2, 64], strides = [1, 1]} : vector<2x256xf32> to vector<2x64xf32>
    %144 = vector.extract_strided_slice %141 {offsets = [0, 128], sizes = [2, 64], strides = [1, 1]} : vector<2x256xf32> to vector<2x64xf32>
    %145 = vector.extract_strided_slice %141 {offsets = [0, 192], sizes = [2, 64], strides = [1, 1]} : vector<2x256xf32> to vector<2x64xf32>
    %146 = arith.mulf %143, %123 : vector<2x64xf32>
    %147 = arith.mulf %142, %144 : vector<2x64xf32>
    %148 = arith.addf %146, %147 : vector<2x64xf32>
    %149 = math.tanh %148 : vector<2x64xf32>
    %150 = arith.mulf %145, %149 : vector<2x64xf32>
    %151 = arith.index_cast %c5_i32 : i32 to index
    %c0_35 = arith.constant 0 : index
    %c0_36 = arith.constant 0 : index
    %152 = vector.load %arg12[%151, %c0_35, %c0_36] : memref<8x2x64xf32, #tpu.memory_space<vmem>>, vector<1x2x64xf32>
    %153 = vector.shape_cast %152 : vector<1x2x64xf32> to vector<2x64xf32>
    %154 = vector.shape_cast %150 : vector<2x64xf32> to vector<1x2x64xf32>
    tpu.vector_store %arg12[%151, %c0_35, %c0_36], %154 {strides = array<i32>} : memref<8x2x64xf32, #tpu.memory_space<vmem>>, vector<1x2x64xf32>,
    %c6_i32 = arith.constant 6 : i32
    %155 = arith.index_cast %c6_i32 : i32 to index
    %c0_37 = arith.constant 0 : index
    %c0_38 = arith.constant 0 : index
    %156 = vector.load %arg1[%155, %c0_37, %c0_38] : memref<8x2x256xf32, #tpu.memory_space<vmem>>, vector<1x2x256xf32>
    %157 = vector.shape_cast %156 : vector<1x2x256xf32> to vector<2x256xf32>
    %cst_39 = arith.constant dense<0.000000e+00> : vector<2x256xf32>
    %158 = tpu.matmul %150, %2, %cst_39 {dimension_numbers = #tpu.dot_dimension_numbers<[1], [0], [0], [1], [0, 0, 1, 1], [], []>} : vector<2x64xf32>, vector<64x256xf32>, vector<2x256xf32> -> vector<2x256xf32>
    %159 = arith.addf %157, %158 : vector<2x256xf32>
    %160 = vector.broadcast %0 : vector<1x256xf32> to vector<2x256xf32>
    %161 = arith.mulf %159, %160 : vector<2x256xf32>
    %162 = math.tanh %161 : vector<2x256xf32>
    %163 = vector.broadcast %0 : vector<1x256xf32> to vector<2x256xf32>
    %164 = arith.mulf %162, %163 : vector<2x256xf32>
    %165 = vector.broadcast %1 : vector<1x256xf32> to vector<2x256xf32>
    %166 = arith.addf %164, %165 : vector<2x256xf32>
    %167 = vector.extract_strided_slice %166 {offsets = [0, 0], sizes = [2, 64], strides = [1, 1]} : vector<2x256xf32> to vector<2x64xf32>
    %168 = vector.extract_strided_slice %166 {offsets = [0, 64], sizes = [2, 64], strides = [1, 1]} : vector<2x256xf32> to vector<2x64xf32>
    %169 = vector.extract_strided_slice %166 {offsets = [0, 128], sizes = [2, 64], strides = [1, 1]} : vector<2x256xf32> to vector<2x64xf32>
    %170 = vector.extract_strided_slice %166 {offsets = [0, 192], sizes = [2, 64], strides = [1, 1]} : vector<2x256xf32> to vector<2x64xf32>
    %171 = arith.mulf %168, %148 : vector<2x64xf32>
    %172 = arith.mulf %167, %169 : vector<2x64xf32>
    %173 = arith.addf %171, %172 : vector<2x64xf32>
    %174 = math.tanh %173 : vector<2x64xf32>
    %175 = arith.mulf %170, %174 : vector<2x64xf32>
    %176 = arith.index_cast %c6_i32 : i32 to index
    %c0_40 = arith.constant 0 : index
    %c0_41 = arith.constant 0 : index
    %177 = vector.load %arg12[%176, %c0_40, %c0_41] : memref<8x2x64xf32, #tpu.memory_space<vmem>>, vector<1x2x64xf32>
    %178 = vector.shape_cast %177 : vector<1x2x64xf32> to vector<2x64xf32>
    %179 = vector.shape_cast %175 : vector<2x64xf32> to vector<1x2x64xf32>
    tpu.vector_store %arg12[%176, %c0_40, %c0_41], %179 {strides = array<i32>} : memref<8x2x64xf32, #tpu.memory_space<vmem>>, vector<1x2x64xf32>,
    %c7_i32 = arith.constant 7 : i32
    %180 = arith.index_cast %c7_i32 : i32 to index
    %c0_42 = arith.constant 0 : index
    %c0_43 = arith.constant 0 : index
    %181 = vector.load %arg1[%180, %c0_42, %c0_43] : memref<8x2x256xf32, #tpu.memory_space<vmem>>, vector<1x2x256xf32>
    %182 = vector.shape_cast %181 : vector<1x2x256xf32> to vector<2x256xf32>
    %cst_44 = arith.constant dense<0.000000e+00> : vector<2x256xf32>
    %183 = tpu.matmul %175, %2, %cst_44 {dimension_numbers = #tpu.dot_dimension_numbers<[1], [0], [0], [1], [0, 0, 1, 1], [], []>} : vector<2x64xf32>, vector<64x256xf32>, vector<2x256xf32> -> vector<2x256xf32>
    %184 = arith.addf %182, %183 : vector<2x256xf32>
    %185 = vector.broadcast %0 : vector<1x256xf32> to vector<2x256xf32>
    %186 = arith.mulf %184, %185 : vector<2x256xf32>
    %187 = math.tanh %186 : vector<2x256xf32>
    %188 = vector.broadcast %0 : vector<1x256xf32> to vector<2x256xf32>
    %189 = arith.mulf %187, %188 : vector<2x256xf32>
    %190 = vector.broadcast %1 : vector<1x256xf32> to vector<2x256xf32>
    %191 = arith.addf %189, %190 : vector<2x256xf32>
    %192 = vector.extract_strided_slice %191 {offsets = [0, 0], sizes = [2, 64], strides = [1, 1]} : vector<2x256xf32> to vector<2x64xf32>
    %193 = vector.extract_strided_slice %191 {offsets = [0, 64], sizes = [2, 64], strides = [1, 1]} : vector<2x256xf32> to vector<2x64xf32>
    %194 = vector.extract_strided_slice %191 {offsets = [0, 128], sizes = [2, 64], strides = [1, 1]} : vector<2x256xf32> to vector<2x64xf32>
    %195 = vector.extract_strided_slice %191 {offsets = [0, 192], sizes = [2, 64], strides = [1, 1]} : vector<2x256xf32> to vector<2x64xf32>
    %196 = arith.mulf %193, %173 : vector<2x64xf32>
    %197 = arith.mulf %192, %194 : vector<2x64xf32>
    %198 = arith.addf %196, %197 : vector<2x64xf32>
    %199 = math.tanh %198 : vector<2x64xf32>
    %200 = arith.mulf %195, %199 : vector<2x64xf32>
    %201 = arith.index_cast %c7_i32 : i32 to index
    %c0_45 = arith.constant 0 : index
    %c0_46 = arith.constant 0 : index
    %202 = vector.load %arg12[%201, %c0_45, %c0_46] : memref<8x2x64xf32, #tpu.memory_space<vmem>>, vector<1x2x64xf32>
    %203 = vector.shape_cast %202 : vector<1x2x64xf32> to vector<2x64xf32>
    %204 = vector.shape_cast %200 : vector<2x64xf32> to vector<1x2x64xf32>
    tpu.vector_store %arg12[%201, %c0_45, %c0_46], %204 {strides = array<i32>} : memref<8x2x64xf32, #tpu.memory_space<vmem>>, vector<1x2x64xf32>,
    %c8_i32 = arith.constant 8 : i32
    %c0_47 = arith.constant 0 : index
    %c0_48 = arith.constant 0 : index
    %c0_49 = arith.constant 0 : index
    %205 = vector.load %arg12[%c0_47, %c0_48, %c0_49] : memref<8x2x64xf32, #tpu.memory_space<vmem>>, vector<8x2x64xf32>
    %c0_50 = arith.constant 0 : index
    %c0_51 = arith.constant 0 : index
    %206 = vector.load %arg3[%c0_50, %c0_51] : memref<64x256xf32, #tpu.memory_space<vmem>>, vector<64x256xf32>
    "tpu.trace_start"() <{level = 10 : i32, message = "tbh,hk->tbk"}> : () -> ()
    %cst_52 = arith.constant dense<0.000000e+00> : vector<8x2x256xf32>
    %207 = tpu.matmul %205, %206, %cst_52 {dimension_numbers = #tpu.dot_dimension_numbers<[2], [0], [0, 1], [1], [0, 0, 0, 1, 1, 1], [], []>} : vector<8x2x64xf32>, vector<64x256xf32>, vector<8x2x256xf32> -> vector<8x2x256xf32>
    "tpu.trace_stop"() : () -> ()
    %c0_53 = arith.constant 0 : index
    %c0_54 = arith.constant 0 : index
    %208 = vector.load %arg5[%c0_53, %c0_54] : memref<1x256xf32, #tpu.memory_space<vmem>>, vector<1x256xf32>
    %209 = vector.shape_cast %208 : vector<1x256xf32> to vector<1x1x256xf32>
    %210 = vector.broadcast %209 : vector<1x1x256xf32> to vector<8x2x256xf32>
    %211 = arith.addf %207, %210 : vector<8x2x256xf32>
    %c0_55 = arith.constant 0 : index
    %c0_56 = arith.constant 0 : index
    %c0_57 = arith.constant 0 : index
    %212 = vector.load %arg14[%c0_55, %c0_56, %c0_57] : memref<8x2x256xf32, #tpu.memory_space<vmem>>, vector<8x2x256xf32>
    tpu.vector_store %arg14[%c0_55, %c0_56, %c0_57], %211 {strides = array<i32>} : memref<8x2x256xf32, #tpu.memory_space<vmem>>, vector<8x2x256xf32>,
    %c0_i32_58 = arith.constant 0 : i32
    %213 = arith.index_cast %c0_i32_58 : i32 to index
    %c0_59 = arith.constant 0 : index
    %c0_60 = arith.constant 0 : index
    %214 = vector.load %arg14[%213, %c0_59, %c0_60] : memref<8x2x256xf32, #tpu.memory_space<vmem>>, vector<1x2x256xf32>
    %215 = vector.shape_cast %214 : vector<1x2x256xf32> to vector<2x256xf32>
    %cst_61 = arith.constant dense<0.000000e+00> : vector<2x256xf32>
    %216 = tpu.matmul %4, %3, %cst_61 {dimension_numbers = #tpu.dot_dimension_numbers<[1], [0], [0], [1], [0, 0, 1, 1], [], []>} : vector<2x64xf32>, vector<64x256xf32>, vector<2x256xf32> -> vector<2x256xf32>
    %217 = arith.addf %215, %216 : vector<2x256xf32>
    %218 = vector.broadcast %0 : vector<1x256xf32> to vector<2x256xf32>
    %219 = arith.mulf %217, %218 : vector<2x256xf32>
    %220 = math.tanh %219 : vector<2x256xf32>
    %221 = vector.broadcast %0 : vector<1x256xf32> to vector<2x256xf32>
    %222 = arith.mulf %220, %221 : vector<2x256xf32>
    %223 = vector.broadcast %1 : vector<1x256xf32> to vector<2x256xf32>
    %224 = arith.addf %222, %223 : vector<2x256xf32>
    %225 = vector.extract_strided_slice %224 {offsets = [0, 0], sizes = [2, 64], strides = [1, 1]} : vector<2x256xf32> to vector<2x64xf32>
    %226 = vector.extract_strided_slice %224 {offsets = [0, 64], sizes = [2, 64], strides = [1, 1]} : vector<2x256xf32> to vector<2x64xf32>
    %227 = vector.extract_strided_slice %224 {offsets = [0, 128], sizes = [2, 64], strides = [1, 1]} : vector<2x256xf32> to vector<2x64xf32>
    %228 = vector.extract_strided_slice %224 {offsets = [0, 192], sizes = [2, 64], strides = [1, 1]} : vector<2x256xf32> to vector<2x64xf32>
    %229 = arith.mulf %226, %4 : vector<2x64xf32>
    %230 = arith.mulf %225, %227 : vector<2x64xf32>
    %231 = arith.addf %229, %230 : vector<2x64xf32>
    %232 = math.tanh %231 : vector<2x64xf32>
    %233 = arith.mulf %228, %232 : vector<2x64xf32>
    %234 = arith.index_cast %c0_i32_58 : i32 to index
    %c0_62 = arith.constant 0 : index
    %c0_63 = arith.constant 0 : index
    %235 = vector.load %arg13[%234, %c0_62, %c0_63] : memref<8x2x64xf32, #tpu.memory_space<vmem>>, vector<1x2x64xf32>
    %236 = vector.shape_cast %235 : vector<1x2x64xf32> to vector<2x64xf32>
    %237 = vector.shape_cast %233 : vector<2x64xf32> to vector<1x2x64xf32>
    tpu.vector_store %arg13[%234, %c0_62, %c0_63], %237 {strides = array<i32>} : memref<8x2x64xf32, #tpu.memory_space<vmem>>, vector<1x2x64xf32>,
    %c1_i32_64 = arith.constant 1 : i32
    %238 = arith.index_cast %c1_i32_64 : i32 to index
    %c0_65 = arith.constant 0 : index
    %c0_66 = arith.constant 0 : index
    %239 = vector.load %arg14[%238, %c0_65, %c0_66] : memref<8x2x256xf32, #tpu.memory_space<vmem>>, vector<1x2x256xf32>
    %240 = vector.shape_cast %239 : vector<1x2x256xf32> to vector<2x256xf32>
    %cst_67 = arith.constant dense<0.000000e+00> : vector<2x256xf32>
    %241 = tpu.matmul %233, %3, %cst_67 {dimension_numbers = #tpu.dot_dimension_numbers<[1], [0], [0], [1], [0, 0, 1, 1], [], []>} : vector<2x64xf32>, vector<64x256xf32>, vector<2x256xf32> -> vector<2x256xf32>
    %242 = arith.addf %240, %241 : vector<2x256xf32>
    %243 = vector.broadcast %0 : vector<1x256xf32> to vector<2x256xf32>
    %244 = arith.mulf %242, %243 : vector<2x256xf32>
    %245 = math.tanh %244 : vector<2x256xf32>
    %246 = vector.broadcast %0 : vector<1x256xf32> to vector<2x256xf32>
    %247 = arith.mulf %245, %246 : vector<2x256xf32>
    %248 = vector.broadcast %1 : vector<1x256xf32> to vector<2x256xf32>
    %249 = arith.addf %247, %248 : vector<2x256xf32>
    %250 = vector.extract_strided_slice %249 {offsets = [0, 0], sizes = [2, 64], strides = [1, 1]} : vector<2x256xf32> to vector<2x64xf32>
    %251 = vector.extract_strided_slice %249 {offsets = [0, 64], sizes = [2, 64], strides = [1, 1]} : vector<2x256xf32> to vector<2x64xf32>
    %252 = vector.extract_strided_slice %249 {offsets = [0, 128], sizes = [2, 64], strides = [1, 1]} : vector<2x256xf32> to vector<2x64xf32>
    %253 = vector.extract_strided_slice %249 {offsets = [0, 192], sizes = [2, 64], strides = [1, 1]} : vector<2x256xf32> to vector<2x64xf32>
    %254 = arith.mulf %251, %231 : vector<2x64xf32>
    %255 = arith.mulf %250, %252 : vector<2x64xf32>
    %256 = arith.addf %254, %255 : vector<2x64xf32>
    %257 = math.tanh %256 : vector<2x64xf32>
    %258 = arith.mulf %253, %257 : vector<2x64xf32>
    %259 = arith.index_cast %c1_i32_64 : i32 to index
    %c0_68 = arith.constant 0 : index
    %c0_69 = arith.constant 0 : index
    %260 = vector.load %arg13[%259, %c0_68, %c0_69] : memref<8x2x64xf32, #tpu.memory_space<vmem>>, vector<1x2x64xf32>
    %261 = vector.shape_cast %260 : vector<1x2x64xf32> to vector<2x64xf32>
    %262 = vector.shape_cast %258 : vector<2x64xf32> to vector<1x2x64xf32>
    tpu.vector_store %arg13[%259, %c0_68, %c0_69], %262 {strides = array<i32>} : memref<8x2x64xf32, #tpu.memory_space<vmem>>, vector<1x2x64xf32>,
    %c2_i32_70 = arith.constant 2 : i32
    %263 = arith.index_cast %c2_i32_70 : i32 to index
    %c0_71 = arith.constant 0 : index
    %c0_72 = arith.constant 0 : index
    %264 = vector.load %arg14[%263, %c0_71, %c0_72] : memref<8x2x256xf32, #tpu.memory_space<vmem>>, vector<1x2x256xf32>
    %265 = vector.shape_cast %264 : vector<1x2x256xf32> to vector<2x256xf32>
    %cst_73 = arith.constant dense<0.000000e+00> : vector<2x256xf32>
    %266 = tpu.matmul %258, %3, %cst_73 {dimension_numbers = #tpu.dot_dimension_numbers<[1], [0], [0], [1], [0, 0, 1, 1], [], []>} : vector<2x64xf32>, vector<64x256xf32>, vector<2x256xf32> -> vector<2x256xf32>
    %267 = arith.addf %265, %266 : vector<2x256xf32>
    %268 = vector.broadcast %0 : vector<1x256xf32> to vector<2x256xf32>
    %269 = arith.mulf %267, %268 : vector<2x256xf32>
    %270 = math.tanh %269 : vector<2x256xf32>
    %271 = vector.broadcast %0 : vector<1x256xf32> to vector<2x256xf32>
    %272 = arith.mulf %270, %271 : vector<2x256xf32>
    %273 = vector.broadcast %1 : vector<1x256xf32> to vector<2x256xf32>
    %274 = arith.addf %272, %273 : vector<2x256xf32>
    %275 = vector.extract_strided_slice %274 {offsets = [0, 0], sizes = [2, 64], strides = [1, 1]} : vector<2x256xf32> to vector<2x64xf32>
    %276 = vector.extract_strided_slice %274 {offsets = [0, 64], sizes = [2, 64], strides = [1, 1]} : vector<2x256xf32> to vector<2x64xf32>
    %277 = vector.extract_strided_slice %274 {offsets = [0, 128], sizes = [2, 64], strides = [1, 1]} : vector<2x256xf32> to vector<2x64xf32>
    %278 = vector.extract_strided_slice %274 {offsets = [0, 192], sizes = [2, 64], strides = [1, 1]} : vector<2x256xf32> to vector<2x64xf32>
    %279 = arith.mulf %276, %256 : vector<2x64xf32>
    %280 = arith.mulf %275, %277 : vector<2x64xf32>
    %281 = arith.addf %279, %280 : vector<2x64xf32>
    %282 = math.tanh %281 : vector<2x64xf32>
    %283 = arith.mulf %278, %282 : vector<2x64xf32>
    %284 = arith.index_cast %c2_i32_70 : i32 to index
    %c0_74 = arith.constant 0 : index
    %c0_75 = arith.constant 0 : index
    %285 = vector.load %arg13[%284, %c0_74, %c0_75] : memref<8x2x64xf32, #tpu.memory_space<vmem>>, vector<1x2x64xf32>
    %286 = vector.shape_cast %285 : vector<1x2x64xf32> to vector<2x64xf32>
    %287 = vector.shape_cast %283 : vector<2x64xf32> to vector<1x2x64xf32>
    tpu.vector_store %arg13[%284, %c0_74, %c0_75], %287 {strides = array<i32>} : memref<8x2x64xf32, #tpu.memory_space<vmem>>, vector<1x2x64xf32>,
    %c3_i32_76 = arith.constant 3 : i32
    %288 = arith.index_cast %c3_i32_76 : i32 to index
    %c0_77 = arith.constant 0 : index
    %c0_78 = arith.constant 0 : index
    %289 = vector.load %arg14[%288, %c0_77, %c0_78] : memref<8x2x256xf32, #tpu.memory_space<vmem>>, vector<1x2x256xf32>
    %290 = vector.shape_cast %289 : vector<1x2x256xf32> to vector<2x256xf32>
    %cst_79 = arith.constant dense<0.000000e+00> : vector<2x256xf32>
    %291 = tpu.matmul %283, %3, %cst_79 {dimension_numbers = #tpu.dot_dimension_numbers<[1], [0], [0], [1], [0, 0, 1, 1], [], []>} : vector<2x64xf32>, vector<64x256xf32>, vector<2x256xf32> -> vector<2x256xf32>
    %292 = arith.addf %290, %291 : vector<2x256xf32>
    %293 = vector.broadcast %0 : vector<1x256xf32> to vector<2x256xf32>
    %294 = arith.mulf %292, %293 : vector<2x256xf32>
    %295 = math.tanh %294 : vector<2x256xf32>
    %296 = vector.broadcast %0 : vector<1x256xf32> to vector<2x256xf32>
    %297 = arith.mulf %295, %296 : vector<2x256xf32>
    %298 = vector.broadcast %1 : vector<1x256xf32> to vector<2x256xf32>
    %299 = arith.addf %297, %298 : vector<2x256xf32>
    %300 = vector.extract_strided_slice %299 {offsets = [0, 0], sizes = [2, 64], strides = [1, 1]} : vector<2x256xf32> to vector<2x64xf32>
    %301 = vector.extract_strided_slice %299 {offsets = [0, 64], sizes = [2, 64], strides = [1, 1]} : vector<2x256xf32> to vector<2x64xf32>
    %302 = vector.extract_strided_slice %299 {offsets = [0, 128], sizes = [2, 64], strides = [1, 1]} : vector<2x256xf32> to vector<2x64xf32>
    %303 = vector.extract_strided_slice %299 {offsets = [0, 192], sizes = [2, 64], strides = [1, 1]} : vector<2x256xf32> to vector<2x64xf32>
    %304 = arith.mulf %301, %281 : vector<2x64xf32>
    %305 = arith.mulf %300, %302 : vector<2x64xf32>
    %306 = arith.addf %304, %305 : vector<2x64xf32>
    %307 = math.tanh %306 : vector<2x64xf32>
    %308 = arith.mulf %303, %307 : vector<2x64xf32>
    %309 = arith.index_cast %c3_i32_76 : i32 to index
    %c0_80 = arith.constant 0 : index
    %c0_81 = arith.constant 0 : index
    %310 = vector.load %arg13[%309, %c0_80, %c0_81] : memref<8x2x64xf32, #tpu.memory_space<vmem>>, vector<1x2x64xf32>
    %311 = vector.shape_cast %310 : vector<1x2x64xf32> to vector<2x64xf32>
    %312 = vector.shape_cast %308 : vector<2x64xf32> to vector<1x2x64xf32>
    tpu.vector_store %arg13[%309, %c0_80, %c0_81], %312 {strides = array<i32>} : memref<8x2x64xf32, #tpu.memory_space<vmem>>, vector<1x2x64xf32>,
    %c4_i32_82 = arith.constant 4 : i32
    %313 = arith.index_cast %c4_i32_82 : i32 to index
    %c0_83 = arith.constant 0 : index
    %c0_84 = arith.constant 0 : index
    %314 = vector.load %arg14[%313, %c0_83, %c0_84] : memref<8x2x256xf32, #tpu.memory_space<vmem>>, vector<1x2x256xf32>
    %315 = vector.shape_cast %314 : vector<1x2x256xf32> to vector<2x256xf32>
    %cst_85 = arith.constant dense<0.000000e+00> : vector<2x256xf32>
    %316 = tpu.matmul %308, %3, %cst_85 {dimension_numbers = #tpu.dot_dimension_numbers<[1], [0], [0], [1], [0, 0, 1, 1], [], []>} : vector<2x64xf32>, vector<64x256xf32>, vector<2x256xf32> -> vector<2x256xf32>
    %317 = arith.addf %315, %316 : vector<2x256xf32>
    %318 = vector.broadcast %0 : vector<1x256xf32> to vector<2x256xf32>
    %319 = arith.mulf %317, %318 : vector<2x256xf32>
    %320 = math.tanh %319 : vector<2x256xf32>
    %321 = vector.broadcast %0 : vector<1x256xf32> to vector<2x256xf32>
    %322 = arith.mulf %320, %321 : vector<2x256xf32>
    %323 = vector.broadcast %1 : vector<1x256xf32> to vector<2x256xf32>
    %324 = arith.addf %322, %323 : vector<2x256xf32>
    %325 = vector.extract_strided_slice %324 {offsets = [0, 0], sizes = [2, 64], strides = [1, 1]} : vector<2x256xf32> to vector<2x64xf32>
    %326 = vector.extract_strided_slice %324 {offsets = [0, 64], sizes = [2, 64], strides = [1, 1]} : vector<2x256xf32> to vector<2x64xf32>
    %327 = vector.extract_strided_slice %324 {offsets = [0, 128], sizes = [2, 64], strides = [1, 1]} : vector<2x256xf32> to vector<2x64xf32>
    %328 = vector.extract_strided_slice %324 {offsets = [0, 192], sizes = [2, 64], strides = [1, 1]} : vector<2x256xf32> to vector<2x64xf32>
    %329 = arith.mulf %326, %306 : vector<2x64xf32>
    %330 = arith.mulf %325, %327 : vector<2x64xf32>
    %331 = arith.addf %329, %330 : vector<2x64xf32>
    %332 = math.tanh %331 : vector<2x64xf32>
    %333 = arith.mulf %328, %332 : vector<2x64xf32>
    %334 = arith.index_cast %c4_i32_82 : i32 to index
    %c0_86 = arith.constant 0 : index
    %c0_87 = arith.constant 0 : index
    %335 = vector.load %arg13[%334, %c0_86, %c0_87] : memref<8x2x64xf32, #tpu.memory_space<vmem>>, vector<1x2x64xf32>
    %336 = vector.shape_cast %335 : vector<1x2x64xf32> to vector<2x64xf32>
    %337 = vector.shape_cast %333 : vector<2x64xf32> to vector<1x2x64xf32>
    tpu.vector_store %arg13[%334, %c0_86, %c0_87], %337 {strides = array<i32>} : memref<8x2x64xf32, #tpu.memory_space<vmem>>, vector<1x2x64xf32>,
    %c5_i32_88 = arith.constant 5 : i32
    %338 = arith.index_cast %c5_i32_88 : i32 to index
    %c0_89 = arith.constant 0 : index
    %c0_90 = arith.constant 0 : index
    %339 = vector.load %arg14[%338, %c0_89, %c0_90] : memref<8x2x256xf32, #tpu.memory_space<vmem>>, vector<1x2x256xf32>
    %340 = vector.shape_cast %339 : vector<1x2x256xf32> to vector<2x256xf32>
    %cst_91 = arith.constant dense<0.000000e+00> : vector<2x256xf32>
    %341 = tpu.matmul %333, %3, %cst_91 {dimension_numbers = #tpu.dot_dimension_numbers<[1], [0], [0], [1], [0, 0, 1, 1], [], []>} : vector<2x64xf32>, vector<64x256xf32>, vector<2x256xf32> -> vector<2x256xf32>
    %342 = arith.addf %340, %341 : vector<2x256xf32>
    %343 = vector.broadcast %0 : vector<1x256xf32> to vector<2x256xf32>
    %344 = arith.mulf %342, %343 : vector<2x256xf32>
    %345 = math.tanh %344 : vector<2x256xf32>
    %346 = vector.broadcast %0 : vector<1x256xf32> to vector<2x256xf32>
    %347 = arith.mulf %345, %346 : vector<2x256xf32>
    %348 = vector.broadcast %1 : vector<1x256xf32> to vector<2x256xf32>
    %349 = arith.addf %347, %348 : vector<2x256xf32>
    %350 = vector.extract_strided_slice %349 {offsets = [0, 0], sizes = [2, 64], strides = [1, 1]} : vector<2x256xf32> to vector<2x64xf32>
    %351 = vector.extract_strided_slice %349 {offsets = [0, 64], sizes = [2, 64], strides = [1, 1]} : vector<2x256xf32> to vector<2x64xf32>
    %352 = vector.extract_strided_slice %349 {offsets = [0, 128], sizes = [2, 64], strides = [1, 1]} : vector<2x256xf32> to vector<2x64xf32>
    %353 = vector.extract_strided_slice %349 {offsets = [0, 192], sizes = [2, 64], strides = [1, 1]} : vector<2x256xf32> to vector<2x64xf32>
    %354 = arith.mulf %351, %331 : vector<2x64xf32>
    %355 = arith.mulf %350, %352 : vector<2x64xf32>
    %356 = arith.addf %354, %355 : vector<2x64xf32>
    %357 = math.tanh %356 : vector<2x64xf32>
    %358 = arith.mulf %353, %357 : vector<2x64xf32>
    %359 = arith.index_cast %c5_i32_88 : i32 to index
    %c0_92 = arith.constant 0 : index
    %c0_93 = arith.constant 0 : index
    %360 = vector.load %arg13[%359, %c0_92, %c0_93] : memref<8x2x64xf32, #tpu.memory_space<vmem>>, vector<1x2x64xf32>
    %361 = vector.shape_cast %360 : vector<1x2x64xf32> to vector<2x64xf32>
    %362 = vector.shape_cast %358 : vector<2x64xf32> to vector<1x2x64xf32>
    tpu.vector_store %arg13[%359, %c0_92, %c0_93], %362 {strides = array<i32>} : memref<8x2x64xf32, #tpu.memory_space<vmem>>, vector<1x2x64xf32>,
    %c6_i32_94 = arith.constant 6 : i32
    %363 = arith.index_cast %c6_i32_94 : i32 to index
    %c0_95 = arith.constant 0 : index
    %c0_96 = arith.constant 0 : index
    %364 = vector.load %arg14[%363, %c0_95, %c0_96] : memref<8x2x256xf32, #tpu.memory_space<vmem>>, vector<1x2x256xf32>
    %365 = vector.shape_cast %364 : vector<1x2x256xf32> to vector<2x256xf32>
    %cst_97 = arith.constant dense<0.000000e+00> : vector<2x256xf32>
    %366 = tpu.matmul %358, %3, %cst_97 {dimension_numbers = #tpu.dot_dimension_numbers<[1], [0], [0], [1], [0, 0, 1, 1], [], []>} : vector<2x64xf32>, vector<64x256xf32>, vector<2x256xf32> -> vector<2x256xf32>
    %367 = arith.addf %365, %366 : vector<2x256xf32>
    %368 = vector.broadcast %0 : vector<1x256xf32> to vector<2x256xf32>
    %369 = arith.mulf %367, %368 : vector<2x256xf32>
    %370 = math.tanh %369 : vector<2x256xf32>
    %371 = vector.broadcast %0 : vector<1x256xf32> to vector<2x256xf32>
    %372 = arith.mulf %370, %371 : vector<2x256xf32>
    %373 = vector.broadcast %1 : vector<1x256xf32> to vector<2x256xf32>
    %374 = arith.addf %372, %373 : vector<2x256xf32>
    %375 = vector.extract_strided_slice %374 {offsets = [0, 0], sizes = [2, 64], strides = [1, 1]} : vector<2x256xf32> to vector<2x64xf32>
    %376 = vector.extract_strided_slice %374 {offsets = [0, 64], sizes = [2, 64], strides = [1, 1]} : vector<2x256xf32> to vector<2x64xf32>
    %377 = vector.extract_strided_slice %374 {offsets = [0, 128], sizes = [2, 64], strides = [1, 1]} : vector<2x256xf32> to vector<2x64xf32>
    %378 = vector.extract_strided_slice %374 {offsets = [0, 192], sizes = [2, 64], strides = [1, 1]} : vector<2x256xf32> to vector<2x64xf32>
    %379 = arith.mulf %376, %356 : vector<2x64xf32>
    %380 = arith.mulf %375, %377 : vector<2x64xf32>
    %381 = arith.addf %379, %380 : vector<2x64xf32>
    %382 = math.tanh %381 : vector<2x64xf32>
    %383 = arith.mulf %378, %382 : vector<2x64xf32>
    %384 = arith.index_cast %c6_i32_94 : i32 to index
    %c0_98 = arith.constant 0 : index
    %c0_99 = arith.constant 0 : index
    %385 = vector.load %arg13[%384, %c0_98, %c0_99] : memref<8x2x64xf32, #tpu.memory_space<vmem>>, vector<1x2x64xf32>
    %386 = vector.shape_cast %385 : vector<1x2x64xf32> to vector<2x64xf32>
    %387 = vector.shape_cast %383 : vector<2x64xf32> to vector<1x2x64xf32>
    tpu.vector_store %arg13[%384, %c0_98, %c0_99], %387 {strides = array<i32>} : memref<8x2x64xf32, #tpu.memory_space<vmem>>, vector<1x2x64xf32>,
    %c7_i32_100 = arith.constant 7 : i32
    %388 = arith.index_cast %c7_i32_100 : i32 to index
    %c0_101 = arith.constant 0 : index
    %c0_102 = arith.constant 0 : index
    %389 = vector.load %arg14[%388, %c0_101, %c0_102] : memref<8x2x256xf32, #tpu.memory_space<vmem>>, vector<1x2x256xf32>
    %390 = vector.shape_cast %389 : vector<1x2x256xf32> to vector<2x256xf32>
    %cst_103 = arith.constant dense<0.000000e+00> : vector<2x256xf32>
    %391 = tpu.matmul %383, %3, %cst_103 {dimension_numbers = #tpu.dot_dimension_numbers<[1], [0], [0], [1], [0, 0, 1, 1], [], []>} : vector<2x64xf32>, vector<64x256xf32>, vector<2x256xf32> -> vector<2x256xf32>
    %392 = arith.addf %390, %391 : vector<2x256xf32>
    %393 = vector.broadcast %0 : vector<1x256xf32> to vector<2x256xf32>
    %394 = arith.mulf %392, %393 : vector<2x256xf32>
    %395 = math.tanh %394 : vector<2x256xf32>
    %396 = vector.broadcast %0 : vector<1x256xf32> to vector<2x256xf32>
    %397 = arith.mulf %395, %396 : vector<2x256xf32>
    %398 = vector.broadcast %1 : vector<1x256xf32> to vector<2x256xf32>
    %399 = arith.addf %397, %398 : vector<2x256xf32>
    %400 = vector.extract_strided_slice %399 {offsets = [0, 0], sizes = [2, 64], strides = [1, 1]} : vector<2x256xf32> to vector<2x64xf32>
    %401 = vector.extract_strided_slice %399 {offsets = [0, 64], sizes = [2, 64], strides = [1, 1]} : vector<2x256xf32> to vector<2x64xf32>
    %402 = vector.extract_strided_slice %399 {offsets = [0, 128], sizes = [2, 64], strides = [1, 1]} : vector<2x256xf32> to vector<2x64xf32>
    %403 = vector.extract_strided_slice %399 {offsets = [0, 192], sizes = [2, 64], strides = [1, 1]} : vector<2x256xf32> to vector<2x64xf32>
    %404 = arith.mulf %401, %381 : vector<2x64xf32>
    %405 = arith.mulf %400, %402 : vector<2x64xf32>
    %406 = arith.addf %404, %405 : vector<2x64xf32>
    %407 = math.tanh %406 : vector<2x64xf32>
    %408 = arith.mulf %403, %407 : vector<2x64xf32>
    %409 = arith.index_cast %c7_i32_100 : i32 to index
    %c0_104 = arith.constant 0 : index
    %c0_105 = arith.constant 0 : index
    %410 = vector.load %arg13[%409, %c0_104, %c0_105] : memref<8x2x64xf32, #tpu.memory_space<vmem>>, vector<1x2x64xf32>
    %411 = vector.shape_cast %410 : vector<1x2x64xf32> to vector<2x64xf32>
    %412 = vector.shape_cast %408 : vector<2x64xf32> to vector<1x2x64xf32>
    tpu.vector_store %arg13[%409, %c0_104, %c0_105], %412 {strides = array<i32>} : memref<8x2x64xf32, #tpu.memory_space<vmem>>, vector<1x2x64xf32>,
    %c8_i32_106 = arith.constant 8 : i32
    %c0_107 = arith.constant 0 : index
    %c0_108 = arith.constant 0 : index
    %c0_109 = arith.constant 0 : index
    %413 = vector.load %arg13[%c0_107, %c0_108, %c0_109] : memref<8x2x64xf32, #tpu.memory_space<vmem>>, vector<8x2x64xf32>
    %c0_110 = arith.constant 0 : index
    %c0_111 = arith.constant 0 : index
    %414 = vector.load %arg6[%c0_110, %c0_111] : memref<64x64xf32, #tpu.memory_space<vmem>>, vector<64x64xf32>
    "tpu.trace_start"() <{level = 10 : i32, message = "tbh,hk->tbk"}> : () -> ()
    %cst_112 = arith.constant dense<0.000000e+00> : vector<8x2x64xf32>
    %415 = tpu.matmul %413, %414, %cst_112 {dimension_numbers = #tpu.dot_dimension_numbers<[2], [0], [0, 1], [1], [0, 0, 0, 1, 1, 1], [], []>} : vector<8x2x64xf32>, vector<64x64xf32>, vector<8x2x64xf32> -> vector<8x2x64xf32>
    "tpu.trace_stop"() : () -> ()
    %c0_113 = arith.constant 0 : index
    %c0_114 = arith.constant 0 : index
    %416 = vector.load %arg7[%c0_113, %c0_114] : memref<1x64xf32, #tpu.memory_space<vmem>>, vector<1x64xf32>
    %417 = vector.shape_cast %416 : vector<1x64xf32> to vector<1x1x64xf32>
    %418 = vector.broadcast %417 : vector<1x1x64xf32> to vector<8x2x64xf32>
    %419 = arith.addf %415, %418 : vector<8x2x64xf32>
    %420 = math.tanh %419 : vector<8x2x64xf32>
    %c0_115 = arith.constant 0 : index
    %c0_116 = arith.constant 0 : index
    %421 = vector.load %arg8[%c0_115, %c0_116] : memref<1x64xf32, #tpu.memory_space<vmem>>, vector<1x64xf32>
    %422 = vector.shape_cast %421 : vector<1x64xf32> to vector<1x1x64xf32>
    %423 = vector.broadcast %422 : vector<1x1x64xf32> to vector<8x2x64xf32>
    %424 = arith.mulf %420, %423 : vector<8x2x64xf32>
    %cst_117 = arith.constant dense<0.000000e+00> : vector<8x2xf32>
    %425 = vector.multi_reduction <add>, %424, %cst_117 [2] : vector<8x2x64xf32> to vector<8x2xf32>
    %426 = vector.shape_cast %425 : vector<8x2xf32> to vector<8x2x1xf32>
    %cst_118 = arith.constant dense<0xFF800000> : vector<2x1xf32>
    %427 = vector.multi_reduction <maximumf>, %426, %cst_118 [0] : vector<8x2x1xf32> to vector<2x1xf32>
    %428 = vector.shape_cast %427 : vector<2x1xf32> to vector<1x2x1xf32>
    %429 = vector.broadcast %428 : vector<1x2x1xf32> to vector<8x2x1xf32>
    %430 = arith.subf %426, %429 : vector<8x2x1xf32>
    %431 = math.exp %430 : vector<8x2x1xf32>
    %cst_119 = arith.constant dense<0.000000e+00> : vector<2x1xf32>
    %432 = vector.multi_reduction <add>, %431, %cst_119 [0] : vector<8x2x1xf32> to vector<2x1xf32>
    %433 = vector.shape_cast %432 : vector<2x1xf32> to vector<1x2x1xf32>
    %434 = vector.broadcast %433 : vector<1x2x1xf32> to vector<8x2x1xf32>
    %435 = arith.divf %431, %434 : vector<8x2x1xf32>
    %436 = vector.broadcast %435 : vector<8x2x1xf32> to vector<8x2x64xf32>
    %437 = arith.mulf %413, %436 : vector<8x2x64xf32>
    %cst_120 = arith.constant dense<0.000000e+00> : vector<2x64xf32>
    %438 = vector.multi_reduction <add>, %437, %cst_120 [0] : vector<8x2x64xf32> to vector<2x64xf32>
    %c7 = arith.constant 7 : index
    %c0_121 = arith.constant 0 : index
    %c0_122 = arith.constant 0 : index
    %439 = vector.load %arg13[%c7, %c0_121, %c0_122] : memref<8x2x64xf32, #tpu.memory_space<vmem>>, vector<1x2x64xf32>
    %440 = vector.shape_cast %439 : vector<1x2x64xf32> to vector<2x64xf32>
    %c0_123 = arith.constant 0 : index
    %c0_124 = arith.constant 0 : index
    %c0_125 = arith.constant 0 : index
    %441 = vector.load %arg11[%c0_123, %c0_124, %c0_125] : memref<2x2x64xf32, #tpu.memory_space<vmem>>, vector<1x2x64xf32>
    %442 = vector.shape_cast %441 : vector<1x2x64xf32> to vector<2x64xf32>
    %443 = vector.shape_cast %440 : vector<2x64xf32> to vector<1x2x64xf32>
    tpu.vector_store %arg11[%c0_123, %c0_124, %c0_125], %443 {strides = array<i32>} : memref<2x2x64xf32, #tpu.memory_space<vmem>>, vector<1x2x64xf32>,
    %c1 = arith.constant 1 : index
    %c0_126 = arith.constant 0 : index
    %c0_127 = arith.constant 0 : index
    %444 = vector.load %arg11[%c1, %c0_126, %c0_127] : memref<2x2x64xf32, #tpu.memory_space<vmem>>, vector<1x2x64xf32>
    %445 = vector.shape_cast %444 : vector<1x2x64xf32> to vector<2x64xf32>
    %446 = vector.shape_cast %438 : vector<2x64xf32> to vector<1x2x64xf32>
    tpu.vector_store %arg11[%c1, %c0_126, %c0_127], %446 {strides = array<i32>} : memref<2x2x64xf32, #tpu.memory_space<vmem>>, vector<1x2x64xf32>,
    return
  }
  func.func @transform_0(%arg0: i32) -> (i32, i32, i32) {
    %c0_i32 = arith.constant 0 : i32
    %c0_i32_0 = arith.constant 0 : i32
    %c0_i32_1 = arith.constant 0 : i32
    %c0_i32_2 = arith.constant 0 : i32
    return %c0_i32, %c0_i32_0, %c0_i32_1 : i32, i32, i32
  }
  func.func @transform_1(%arg0: i32) -> (i32, i32) {
    %c0_i32 = arith.constant 0 : i32
    %c0_i32_0 = arith.constant 0 : i32
    %c0_i32_1 = arith.constant 0 : i32
    return %c0_i32, %c0_i32_0 : i32, i32
  }
  func.func @transform_2(%arg0: i32) -> (i32, i32) {
    %c0_i32 = arith.constant 0 : i32
    %c0_i32_0 = arith.constant 0 : i32
    %c0_i32_1 = arith.constant 0 : i32
    return %c0_i32, %c0_i32_0 : i32, i32
  }
  func.func @transform_3(%arg0: i32) -> (i32, i32) {
    %c0_i32 = arith.constant 0 : i32
    %c0_i32_0 = arith.constant 0 : i32
    %c0_i32_1 = arith.constant 0 : i32
    return %c0_i32, %c0_i32_0 : i32, i32
  }
  func.func @transform_4(%arg0: i32) -> (i32, i32) {
    %c0_i32 = arith.constant 0 : i32
    %c0_i32_0 = arith.constant 0 : i32
    %c0_i32_1 = arith.constant 0 : i32
    return %c0_i32, %c0_i32_0 : i32, i32
  }
  func.func @transform_5(%arg0: i32) -> (i32, i32) {
    %c0_i32 = arith.constant 0 : i32
    %c0_i32_0 = arith.constant 0 : i32
    %c0_i32_1 = arith.constant 0 : i32
    return %c0_i32, %c0_i32_0 : i32, i32
  }
  func.func @transform_6(%arg0: i32) -> (i32, i32) {
    %c0_i32 = arith.constant 0 : i32
    %c0_i32_0 = arith.constant 0 : i32
    %c0_i32_1 = arith.constant 0 : i32
    return %c0_i32, %c0_i32_0 : i32, i32
  }
  func.func @transform_7(%arg0: i32) -> (i32, i32) {
    %c0_i32 = arith.constant 0 : i32
    %c0_i32_0 = arith.constant 0 : i32
    %c0_i32_1 = arith.constant 0 : i32
    return %c0_i32, %c0_i32_0 : i32, i32
  }
  func.func @transform_8(%arg0: i32) -> (i32, i32) {
    %c0_i32 = arith.constant 0 : i32
    %c0_i32_0 = arith.constant 0 : i32
    %c0_i32_1 = arith.constant 0 : i32
    return %c0_i32, %c0_i32_0 : i32, i32
  }
  func.func @transform_9(%arg0: i32) -> (i32, i32) {
    %c0_i32 = arith.constant 0 : i32
    %c0_i32_0 = arith.constant 0 : i32
    %c0_i32_1 = arith.constant 0 : i32
    return %c0_i32, %c0_i32_0 : i32, i32
  }
  func.func @transform_10(%arg0: i32) -> (i32, i32, i32) {
    %c0_i32 = arith.constant 0 : i32
    %c0_i32_0 = arith.constant 0 : i32
    %c0_i32_1 = arith.constant 0 : i32
    %c0_i32_2 = arith.constant 0 : i32
    return %c0_i32, %c0_i32_0, %c0_i32_1 : i32, i32, i32
  }
}

</mosaic_0001>

<llo_original>
// kernel: lstm_model_forward.1
$region0: #{lstm_model_forward.1}
  #allocation0 [shape = 'u32[]', space=smem, size = 0x4, offset = 0x4, fixed_abs, tag = 'smem constant byte address 0x4 - core index']
  #allocation1 [shape = 'u32[72,128]{1,0:T(1,128)}', space=vmem, size = 0x9000, scoped, tag = 'internal scratch']
  #allocation2 [shape = 'f32[8,2,64]{2,1,0:T(2,128)}', space=vmem, size = 0x2000, scoped, tag = 'scratch operand']
  #allocation3 [shape = 'f32[8,2,64]{2,1,0:T(2,128)}', space=vmem, size = 0x2000, scoped, tag = 'scratch operand']
  #allocation4 [shape = 'f32[8,2,256]{2,1,0:T(2,128)}', space=vmem, size = 0x4000, scoped, tag = 'scratch operand']
  %s0 = inlined_call_operand.vmem [shape: f32[8,2,256], index: 0, kind: input, shape index: {}]
  %s1 = inlined_call_operand.vmem [shape: f32[64,256], index: 1, kind: input, shape index: {}]
  %s2 = inlined_call_operand.hbm [shape: f32[64,256], index: 2, kind: input, shape index: {}]
  %s3 = inlined_call_operand.hbm [shape: f32[64,256], index: 3, kind: input, shape index: {}]
  %s4 = inlined_call_operand.vmem [shape: f32[1,256], index: 4, kind: input, shape index: {}]
  %s5 = inlined_call_operand.hbm [shape: f32[64,64], index: 5, kind: input, shape index: {}]
  %s6 = inlined_call_operand.vmem [shape: f32[1,64], index: 6, kind: input, shape index: {}]
  %s7 = inlined_call_operand.vmem [shape: f32[1,64], index: 7, kind: input, shape index: {}]
  %s8 = inlined_call_operand.vmem [shape: f32[1,256], index: 8, kind: input, shape index: {}]
  %s9 = inlined_call_operand.vmem [shape: f32[1,256], index: 9, kind: input, shape index: {}]
  %s10 = inlined_call_operand.vmem [shape: f32[2,2,64], index: 10, kind: output, shape index: {}]
  %s11 = sld [smem:[#allocation0]]
  $region62: #{lstm_model_forward.1} parent=0
    _
  %s13 = ssub.s32 1, %s11
  %s14 = scalar_select 0, %s13, %s11
  $region1: #{lstm_model_forward.1} parent=0
    #allocation5 [shape = 'u8[65536]{0}', space=vmem, size = 0x10000, scoped, tag = 'input window, operand 2, single buffered']
    #allocation6 [shape = 's32[1]{0}', space=sflag, size = 0x4, scoped, tag = 'scoped memory for lstm_model_forward.1']
    #allocation7 [shape = 'u8[65536]{0}', space=vmem, size = 0x10000, scoped, tag = 'input window, operand 3, single buffered']
    #allocation8 [shape = 's32[1]{0}', space=sflag, size = 0x4, scoped, tag = 'scoped memory for lstm_model_forward.1']
    #allocation9 [shape = 'u8[32768]{0}', space=vmem, size = 0x8000, scoped, tag = 'input window, operand 5, single buffered']
    %15 = vsyncpa [#allocation6], 0
    %16 = vsyncpa [#allocation8], 0
    // Predicated region
    $region2: #{lstm_model_forward.1} parent=1 // pred_check
      _
    $region3: #{lstm_model_forward.1} parent=1 // pred_check_branch
      %18 = sbr.rel (0) target = $region5
    $region4: #{lstm_model_forward.1} parent=1 // pred_region
      _
    $region5: #{lstm_model_forward.1} parent=1 // pred_fallthru
      _
    // Predicated region
    $region6: #{lstm_model_forward.1} parent=1 // pred_check
      _
    $region7: #{lstm_model_forward.1} parent=1 // pred_check_branch
      %20 = sbr.rel (0) target = $region9
    $region8: #{lstm_model_forward.1} parent=1 // pred_region
      _
    $region9: #{lstm_model_forward.1} parent=1 // pred_fallthru
      _
    // Predicated region
    $region10: #{lstm_model_forward.1} parent=1 // pred_check
      _
    $region11: #{lstm_model_forward.1} parent=1 // pred_check_branch
      %22 = sbr.rel (0) target = $region13
    $region12: #{lstm_model_forward.1} parent=1 // pred_region
      %24 = vsyncadd [#allocation6], 0
      %s25 = sshll.u32 %s2, 4
      %s26 = int_to_ptr.hbm [resolvable:$true] %s25
      %s27 = sshll.u32 [#allocation5], 4
      %s28 = int_to_ptr.vmem [resolvable:$true] %s27
      %33 = dma.hbm_to_vmem [thread:$0]  %s26, 2048, %s28, [#allocation6], 256, 256, 16
    $region13: #{lstm_model_forward.1} parent=1 // pred_fallthru
      _
    // Predicated region
    $region14: #{lstm_model_forward.1} parent=1 // pred_check
      _
    $region15: #{lstm_model_forward.1} parent=1 // pred_check_branch
      %35 = sbr.rel (0) target = $region17
    $region16: #{lstm_model_forward.1} parent=1 // pred_region
      %37 = vsyncadd [#allocation8], 0
      %s38 = sshll.u32 %s3, 4
      %s39 = int_to_ptr.hbm [resolvable:$true] %s38
      %s40 = sshll.u32 [#allocation7], 4
      %s41 = int_to_ptr.vmem [resolvable:$true] %s40
      %46 = dma.hbm_to_vmem [thread:$0]  %s39, 2048, %s41, [#allocation8], 256, 256, 16
    $region17: #{lstm_model_forward.1} parent=1 // pred_fallthru
      _
    // Predicated region
    $region18: #{lstm_model_forward.1} parent=1 // pred_check
      _
    $region19: #{lstm_model_forward.1} parent=1 // pred_check_branch
      %48 = sbr.rel (0) target = $region21
    $region20: #{lstm_model_forward.1} parent=1 // pred_region
      _
    $region21: #{lstm_model_forward.1} parent=1 // pred_fallthru
      _
    // Predicated region
    $region22: #{lstm_model_forward.1} parent=1 // pred_check
      _
    $region23: #{lstm_model_forward.1} parent=1 // pred_check_branch
      %50 = sbr.rel (0) target = $region25
    $region24: #{lstm_model_forward.1} parent=1 // pred_region
      %52 = vsyncadd [#allocation8], 0
      %s53 = sshll.u32 %s5, 4
      %s54 = int_to_ptr.hbm [resolvable:$true] %s53
      %s55 = sshll.u32 [#allocation9], 4
      %s56 = int_to_ptr.vmem [resolvable:$true] %s55
      %61 = dma.hbm_to_vmem [thread:$0]  %s54, 1024, %s56, [#allocation8], 128, 128, 8
    $region25: #{lstm_model_forward.1} parent=1 // pred_fallthru
      _
    // Predicated region
    $region26: #{lstm_model_forward.1} parent=1 // pred_check
      _
    $region27: #{lstm_model_forward.1} parent=1 // pred_check_branch
      %63 = sbr.rel (0) target = $region29
    $region28: #{lstm_model_forward.1} parent=1 // pred_region
      _
    $region29: #{lstm_model_forward.1} parent=1 // pred_fallthru
      _
    // Predicated region
    $region30: #{lstm_model_forward.1} parent=1 // pred_check
      _
    $region31: #{lstm_model_forward.1} parent=1 // pred_check_branch
      %65 = sbr.rel (0) target = $region33
    $region32: #{lstm_model_forward.1} parent=1 // pred_region
      _
    $region33: #{lstm_model_forward.1} parent=1 // pred_fallthru
      _
    // Predicated region
    $region34: #{lstm_model_forward.1} parent=1 // pred_check
      _
    $region35: #{lstm_model_forward.1} parent=1 // pred_check_branch
      %67 = sbr.rel (0) target = $region37
    $region36: #{lstm_model_forward.1} parent=1 // pred_region
      _
    $region37: #{lstm_model_forward.1} parent=1 // pred_fallthru
      _
    // Predicated region
    $region38: #{lstm_model_forward.1} parent=1 // pred_check
      _
    $region39: #{lstm_model_forward.1} parent=1 // pred_check_branch
      %69 = sbr.rel (0) target = $region41
    $region40: #{lstm_model_forward.1} parent=1 // pred_region
      _
    $region41: #{lstm_model_forward.1} parent=1 // pred_fallthru
      _
    // Predicated region
    $region42: #{lstm_model_forward.1} parent=1 // pred_check
      _
    $region43: #{lstm_model_forward.1} parent=1 // pred_check_branch
      %71 = sbr.rel (0) target = $region45
    $region44: #{lstm_model_forward.1} parent=1 // pred_region
      %73 = dma.done [#allocation6], 2048
    $region45: #{lstm_model_forward.1} parent=1 // pred_fallthru
      _
    // Predicated region
    $region46: #{lstm_model_forward.1} parent=1 // pred_check
      _
    $region47: #{lstm_model_forward.1} parent=1 // pred_check_branch
      %75 = sbr.rel (0) target = $region49
    $region48: #{lstm_model_forward.1} parent=1 // pred_region
      %77 = dma.done [#allocation8], 2048
    $region49: #{lstm_model_forward.1} parent=1 // pred_fallthru
      _
    // Predicated region
    $region50: #{lstm_model_forward.1} parent=1 // pred_check
      _
    $region51: #{lstm_model_forward.1} parent=1 // pred_check_branch
      %79 = sbr.rel (0) target = $region53
    $region52: #{lstm_model_forward.1} parent=1 // pred_region
      %81 = dma.done [#allocation8], 1024
    $region53: #{lstm_model_forward.1} parent=1 // pred_fallthru
      _
    %v82 = vld [vmem:[%s8] sm:$0x3]
    %v83 = vld [vmem:[%s9] sm:$0x3]
    %v84 = vld [vmem:[%s1] sm:$0xff]
    %v85 = vld [vmem:[%s1 + $0x8] sm:$0xff]
    %v86 = vld [vmem:[%s1 + $0x10] sm:$0xff]
    %v87 = vld [vmem:[%s1 + $0x18] sm:$0xff]
    %v88 = vld [vmem:[%s1 + $0x20] sm:$0xff]
    %v89 = vld [vmem:[%s1 + $0x28] sm:$0xff]
    %v90 = vld [vmem:[%s1 + $0x30] sm:$0xff]
    %v91 = vld [vmem:[%s1 + $0x38] sm:$0xff]
    %v92 = vld [vmem:[%s1 + $0x40] sm:$0xff]
    %v93 = vld [vmem:[%s1 + $0x48] sm:$0xff]
    %v94 = vld [vmem:[%s1 + $0x50] sm:$0xff]
    %v95 = vld [vmem:[%s1 + $0x58] sm:$0xff]
    %v96 = vld [vmem:[%s1 + $0x60] sm:$0xff]
    %v97 = vld [vmem:[%s1 + $0x68] sm:$0xff]
    %v98 = vld [vmem:[%s1 + $0x70] sm:$0xff]
    %v99 = vld [vmem:[%s1 + $0x78] sm:$0xff]
    %v100 = vld [vmem:[#allocation7] sm:$0xff]
    %v101 = vld [vmem:[#allocation7 + $0x8] sm:$0xff]
    %v102 = vld [vmem:[#allocation7 + $0x10] sm:$0xff]
    %v103 = vld [vmem:[#allocation7 + $0x18] sm:$0xff]
    %v104 = vld [vmem:[#allocation7 + $0x20] sm:$0xff]
    %v105 = vld [vmem:[#allocation7 + $0x28] sm:$0xff]
    %v106 = vld [vmem:[#allocation7 + $0x30] sm:$0xff]
    %v107 = vld [vmem:[#allocation7 + $0x38] sm:$0xff]
    %v108 = vld [vmem:[#allocation7 + $0x40] sm:$0xff]
    %v109 = vld [vmem:[#allocation7 + $0x48] sm:$0xff]
    %v110 = vld [vmem:[#allocation7 + $0x50] sm:$0xff]
    %v111 = vld [vmem:[#allocation7 + $0x58] sm:$0xff]
    %v112 = vld [vmem:[#allocation7 + $0x60] sm:$0xff]
    %v113 = vld [vmem:[#allocation7 + $0x68] sm:$0xff]
    %v114 = vld [vmem:[#allocation7 + $0x70] sm:$0xff]
    %v115 = vld [vmem:[#allocation7 + $0x78] sm:$0xff]
    %v116 = vld [vmem:[%s0] sm:$0xf]
    %vm117 = vcmask 523264
    %v119 = vsel %vm117, 0.0, 0
    %121 = vmatpush.msra.mxu0 0.0
    %122 = vmatpush.msra.mxu0 0.0
    %123 = vmatpush.msra.mxu0 0.0
    %124 = vmatpush.msra.mxu0 0.0
    %125 = vmatpush.msra.mxu0 0.0
    %126 = vmatpush.msra.mxu0 0.0
    %127 = vmatpush.msra.mxu0 0.0
    %128 = vmatpush.msra.mxu0 0.0
    %129 = vmatpush.msra.mxu0 %v98
    %130 = vmatpush.msra.mxu0 %v96
    %131 = vmatpush.msra.mxu0 %v94
    %132 = vmatpush.msra.mxu0 %v92
    %133 = vmatpush.msra.mxu0 %v90
    %134 = vmatpush.msra.mxu0 %v88
    %135 = vmatpush.msra.mxu0 %v86
    %136 = vmatpush.msra.mxu0 %v84
    %137 = vmatmul.f32.gmra.mxu0 %v119
    %v138 = vpop.f32.mrf.mxu0
    %v139 = vadd.f32 0.0, %v138
    %140 = vdwg.mxu0
    %141 = vmatpush.msra.mxu0 0.0
    %142 = vmatpush.msra.mxu0 0.0
    %143 = vmatpush.msra.mxu0 0.0
    %144 = vmatpush.msra.mxu0 0.0
    %145 = vmatpush.msra.mxu0 0.0
    %146 = vmatpush.msra.mxu0 0.0
    %147 = vmatpush.msra.mxu0 0.0
    %148 = vmatpush.msra.mxu0 0.0
    %149 = vmatpush.msra.mxu0 %v99
    %150 = vmatpush.msra.mxu0 %v97
    %151 = vmatpush.msra.mxu0 %v95
    %152 = vmatpush.msra.mxu0 %v93
    %153 = vmatpush.msra.mxu0 %v91
    %154 = vmatpush.msra.mxu0 %v89
    %155 = vmatpush.msra.mxu0 %v87
    %156 = vmatpush.msra.mxu0 %v85
    %157 = vmatmul.f32.gmra.mxu0 %v119
    %v158 = vpop.f32.mrf.mxu0
    %v159 = vadd.f32 0.0, %v158
    %160 = vdwg.mxu0
    %v163 = vrot.slane %v159, 6
    %vm164 = vcmask 1041408
    %v165 = vsel %vm164, %v139, %v163
    %v167 = vadd.f32 %v116, %v165
    %v169 = vperm.slane %v82, 0
    %v170 = vperm.slane %v82, 1
    %v171 = vrot.slane %v170, 6
    %v172 = vsel %vm164, %v169, %v171
    %v174 = vmul.f32 %v167, %v172
    %v175 = vtanh.pop %v174
    %v176 = vmul.f32 %v175, %v172
    %v178 = vperm.slane %v83, 0
    %v179 = vperm.slane %v83, 1
    %v180 = vrot.slane %v179, 6
    %v181 = vsel %vm164, %v178, %v180
    %v183 = vadd.f32 %v176, %v181
    %v184 = vmul.f32 %v183, 0.0
    %v186 = vrot.slane %v183, 2
    %v188 = vmul.f32 %v183, %v186
    %190 = vrot.lane.b32.xlu0 %v188, 64
    %v191 = vpop.permute.xlu0 %190
    %v193 = vadd.f32 %v184, %v191
    %v194 = vtanh.pop %v193
    %195 = vrot.lane.b32.xlu0 %v183, 64
    %v196 = vpop.permute.xlu0 %195
    %v197 = vrot.slane %v196, 2
    %200 = vrot.lane.b32.xlu0 %v194, 64
    %v201 = vpop.permute.xlu0 %200
    %v203 = vmul.f32 %v197, %v201
    %vm204 = vcmask 517120
    %205 = vst.msk [vmem:[#allocation2] sm:$0x3] %vm204, %v203
    %s206 = scalar_lea.vmem %s0, 4
    %v207 = vld [vmem:[%s206] sm:$0xf]
    %v209 = vsel %vm117, %v203, 0
    %211 = vmatpush.msra.mxu0 0.0
    %212 = vmatpush.msra.mxu0 0.0
    %213 = vmatpush.msra.mxu0 0.0
    %214 = vmatpush.msra.mxu0 0.0
    %215 = vmatpush.msra.mxu0 0.0
    %216 = vmatpush.msra.mxu0 0.0
    %217 = vmatpush.msra.mxu0 0.0
    %218 = vmatpush.msra.mxu0 0.0
    %219 = vmatpush.msra.mxu0 %v98
    %220 = vmatpush.msra.mxu0 %v96
    %221 = vmatpush.msra.mxu0 %v94
    %222 = vmatpush.msra.mxu0 %v92
    %223 = vmatpush.msra.mxu0 %v90
    %224 = vmatpush.msra.mxu0 %v88
    %225 = vmatpush.msra.mxu0 %v86
    %226 = vmatpush.msra.mxu0 %v84
    %227 = vmatmul.f32.gmra.mxu0 %v209
    %v228 = vpop.f32.mrf.mxu0
    %v229 = vadd.f32 0.0, %v228
    %230 = vdwg.mxu0
    %231 = vmatpush.msra.mxu0 0.0
    %232 = vmatpush.msra.mxu0 0.0
    %233 = vmatpush.msra.mxu0 0.0
    %234 = vmatpush.msra.mxu0 0.0
    %235 = vmatpush.msra.mxu0 0.0
    %236 = vmatpush.msra.mxu0 0.0
    %237 = vmatpush.msra.mxu0 0.0
    %238 = vmatpush.msra.mxu0 0.0
    %239 = vmatpush.msra.mxu0 %v99
    %240 = vmatpush.msra.mxu0 %v97
    %241 = vmatpush.msra.mxu0 %v95
    %242 = vmatpush.msra.mxu0 %v93
    %243 = vmatpush.msra.mxu0 %v91
    %244 = vmatpush.msra.mxu0 %v89
    %245 = vmatpush.msra.mxu0 %v87
    %246 = vmatpush.msra.mxu0 %v85
    %247 = vmatmul.f32.gmra.mxu0 %v209
    %v248 = vpop.f32.mrf.mxu0
    %v249 = vadd.f32 0.0, %v248
    %250 = vdwg.mxu0
    %v253 = vrot.slane %v249, 6
    %v254 = vsel %vm164, %v229, %v253
    %v256 = vadd.f32 %v207, %v254
    %v257 = vmul.f32 %v256, %v172
    %v258 = vtanh.pop %v257
    %v259 = vmul.f32 %v258, %v172
    %v260 = vadd.f32 %v259, %v181
    %v261 = vmul.f32 %v260, %v193
    %v263 = vrot.slane %v260, 2
    %v265 = vmul.f32 %v260, %v263
    %267 = vrot.lane.b32.xlu0 %v265, 64
    %v268 = vpop.permute.xlu0 %267
    %v270 = vadd.f32 %v261, %v268
    %v271 = vtanh.pop %v270
    %272 = vrot.lane.b32.xlu0 %v260, 64
    %v273 = vpop.permute.xlu0 %272
    %v274 = vrot.slane %v273, 2
    %277 = vrot.lane.b32.xlu0 %v271, 64
    %v278 = vpop.permute.xlu0 %277
    %v280 = vmul.f32 %v274, %v278
    %s281 = scalar_lea.vmem [#allocation2], 2
    %282 = vst.msk [vmem:[%s281] sm:$0x3] %vm204, %v280
    %s283 = scalar_lea.vmem %s0, 8
    %v284 = vld [vmem:[%s283] sm:$0xf]
    %v286 = vsel %vm117, %v280, 0
    %288 = vmatpush.msra.mxu0 0.0
    %289 = vmatpush.msra.mxu0 0.0
    %290 = vmatpush.msra.mxu0 0.0
    %291 = vmatpush.msra.mxu0 0.0
    %292 = vmatpush.msra.mxu0 0.0
    %293 = vmatpush.msra.mxu0 0.0
    %294 = vmatpush.msra.mxu0 0.0
    %295 = vmatpush.msra.mxu0 0.0
    %296 = vmatpush.msra.mxu0 %v98
    %297 = vmatpush.msra.mxu0 %v96
    %298 = vmatpush.msra.mxu0 %v94
    %299 = vmatpush.msra.mxu0 %v92
    %300 = vmatpush.msra.mxu0 %v90
    %301 = vmatpush.msra.mxu0 %v88
    %302 = vmatpush.msra.mxu0 %v86
    %303 = vmatpush.msra.mxu0 %v84
    %304 = vmatmul.f32.gmra.mxu0 %v286
    %v305 = vpop.f32.mrf.mxu0
    %v306 = vadd.f32 0.0, %v305
    %307 = vdwg.mxu0
    %308 = vmatpush.msra.mxu0 0.0
    %309 = vmatpush.msra.mxu0 0.0
    %310 = vmatpush.msra.mxu0 0.0
    %311 = vmatpush.msra.mxu0 0.0
    %312 = vmatpush.msra.mxu0 0.0
    %313 = vmatpush.msra.mxu0 0.0
    %314 = vmatpush.msra.mxu0 0.0
    %315 = vmatpush.msra.mxu0 0.0
    %316 = vmatpush.msra.mxu0 %v99
    %317 = vmatpush.msra.mxu0 %v97
    %318 = vmatpush.msra.mxu0 %v95
    %319 = vmatpush.msra.mxu0 %v93
    %320 = vmatpush.msra.mxu0 %v91
    %321 = vmatpush.msra.mxu0 %v89
    %322 = vmatpush.msra.mxu0 %v87
    %323 = vmatpush.msra.mxu0 %v85
    %324 = vmatmul.f32.gmra.mxu0 %v286
    %v325 = vpop.f32.mrf.mxu0
    %v326 = vadd.f32 0.0, %v325
    %327 = vdwg.mxu0
    %v330 = vrot.slane %v326, 6
    %v331 = vsel %vm164, %v306, %v330
    %v333 = vadd.f32 %v284, %v331
    %v334 = vmul.f32 %v333, %v172
    %v335 = vtanh.pop %v334
    %v336 = vmul.f32 %v335, %v172
    %v337 = vadd.f32 %v336, %v181
    %v338 = vmul.f32 %v337, %v270
    %v340 = vrot.slane %v337, 2
    %v342 = vmul.f32 %v337, %v340
    %344 = vrot.lane.b32.xlu0 %v342, 64
    %v345 = vpop.permute.xlu0 %344
    %v347 = vadd.f32 %v338, %v345
    %v348 = vtanh.pop %v347
    %349 = vrot.lane.b32.xlu0 %v337, 64
    %v350 = vpop.permute.xlu0 %349
    %v351 = vrot.slane %v350, 2
    %354 = vrot.lane.b32.xlu0 %v348, 64
    %v355 = vpop.permute.xlu0 %354
    %v357 = vmul.f32 %v351, %v355
    %s358 = scalar_lea.vmem [#allocation2], 4
    %359 = vst.msk [vmem:[%s358] sm:$0x3] %vm204, %v357
    %s360 = scalar_lea.vmem %s0, 12
    %v361 = vld [vmem:[%s360] sm:$0xf]
    %v363 = vsel %vm117, %v357, 0
    %365 = vmatpush.msra.mxu0 0.0
    %366 = vmatpush.msra.mxu0 0.0
    %367 = vmatpush.msra.mxu0 0.0
    %368 = vmatpush.msra.mxu0 0.0
    %369 = vmatpush.msra.mxu0 0.0
    %370 = vmatpush.msra.mxu0 0.0
    %371 = vmatpush.msra.mxu0 0.0
    %372 = vmatpush.msra.mxu0 0.0
    %373 = vmatpush.msra.mxu0 %v98
    %374 = vmatpush.msra.mxu0 %v96
    %375 = vmatpush.msra.mxu0 %v94
    %376 = vmatpush.msra.mxu0 %v92
    %377 = vmatpush.msra.mxu0 %v90
    %378 = vmatpush.msra.mxu0 %v88
    %379 = vmatpush.msra.mxu0 %v86
    %380 = vmatpush.msra.mxu0 %v84
    %381 = vmatmul.f32.gmra.mxu0 %v363
    %v382 = vpop.f32.mrf.mxu0
    %v383 = vadd.f32 0.0, %v382
    %384 = vdwg.mxu0
    %385 = vmatpush.msra.mxu0 0.0
    %386 = vmatpush.msra.mxu0 0.0
    %387 = vmatpush.msra.mxu0 0.0
    %388 = vmatpush.msra.mxu0 0.0
    %389 = vmatpush.msra.mxu0 0.0
    %390 = vmatpush.msra.mxu0 0.0
    %391 = vmatpush.msra.mxu0 0.0
    %392 = vmatpush.msra.mxu0 0.0
    %393 = vmatpush.msra.mxu0 %v99
    %394 = vmatpush.msra.mxu0 %v97
    %395 = vmatpush.msra.mxu0 %v95
    %396 = vmatpush.msra.mxu0 %v93
    %397 = vmatpush.msra.mxu0 %v91
    %398 = vmatpush.msra.mxu0 %v89
    %399 = vmatpush.msra.mxu0 %v87
    %400 = vmatpush.msra.mxu0 %v85
    %401 = vmatmul.f32.gmra.mxu0 %v363
    %v402 = vpop.f32.mrf.mxu0
    %v403 = vadd.f32 0.0, %v402
    %404 = vdwg.mxu0
    %v407 = vrot.slane %v403, 6
    %v408 = vsel %vm164, %v383, %v407
    %v410 = vadd.f32 %v361, %v408
    %v411 = vmul.f32 %v410, %v172
    %v412 = vtanh.pop %v411
    %v413 = vmul.f32 %v412, %v172
    %v414 = vadd.f32 %v413, %v181
    %v415 = vmul.f32 %v414, %v347
    %v417 = vrot.slane %v414, 2
    %v419 = vmul.f32 %v414, %v417
    %421 = vrot.lane.b32.xlu0 %v419, 64
    %v422 = vpop.permute.xlu0 %421
    %v424 = vadd.f32 %v415, %v422
    %v425 = vtanh.pop %v424
    %426 = vrot.lane.b32.xlu0 %v414, 64
    %v427 = vpop.permute.xlu0 %426
    %v428 = vrot.slane %v427, 2
    %431 = vrot.lane.b32.xlu0 %v425, 64
    %v432 = vpop.permute.xlu0 %431
    %v434 = vmul.f32 %v428, %v432
    %s435 = scalar_lea.vmem [#allocation2], 6
    %436 = vst.msk [vmem:[%s435] sm:$0x3] %vm204, %v434
    %s437 = scalar_lea.vmem %s0, 16
    %v438 = vld [vmem:[%s437] sm:$0xf]
    %v440 = vsel %vm117, %v434, 0
    %442 = vmatpush.msra.mxu0 0.0
    %443 = vmatpush.msra.mxu0 0.0
    %444 = vmatpush.msra.mxu0 0.0
    %445 = vmatpush.msra.mxu0 0.0
    %446 = vmatpush.msra.mxu0 0.0
    %447 = vmatpush.msra.mxu0 0.0
    %448 = vmatpush.msra.mxu0 0.0
    %449 = vmatpush.msra.mxu0 0.0
    %450 = vmatpush.msra.mxu0 %v98
    %451 = vmatpush.msra.mxu0 %v96
    %452 = vmatpush.msra.mxu0 %v94
    %453 = vmatpush.msra.mxu0 %v92
    %454 = vmatpush.msra.mxu0 %v90
    %455 = vmatpush.msra.mxu0 %v88
    %456 = vmatpush.msra.mxu0 %v86
    %457 = vmatpush.msra.mxu0 %v84
    %458 = vmatmul.f32.gmra.mxu0 %v440
    %v459 = vpop.f32.mrf.mxu0
    %v460 = vadd.f32 0.0, %v459
    %461 = vdwg.mxu0
    %462 = vmatpush.msra.mxu0 0.0
    %463 = vmatpush.msra.mxu0 0.0
    %464 = vmatpush.msra.mxu0 0.0
    %465 = vmatpush.msra.mxu0 0.0
    %466 = vmatpush.msra.mxu0 0.0
    %467 = vmatpush.msra.mxu0 0.0
    %468 = vmatpush.msra.mxu0 0.0
    %469 = vmatpush.msra.mxu0 0.0
    %470 = vmatpush.msra.mxu0 %v99
    %471 = vmatpush.msra.mxu0 %v97
    %472 = vmatpush.msra.mxu0 %v95
    %473 = vmatpush.msra.mxu0 %v93
    %474 = vmatpush.msra.mxu0 %v91
    %475 = vmatpush.msra.mxu0 %v89
    %476 = vmatpush.msra.mxu0 %v87
    %477 = vmatpush.msra.mxu0 %v85
    %478 = vmatmul.f32.gmra.mxu0 %v440
    %v479 = vpop.f32.mrf.mxu0
    %v480 = vadd.f32 0.0, %v479
    %481 = vdwg.mxu0
    %v484 = vrot.slane %v480, 6
    %v485 = vsel %vm164, %v460, %v484
    %v487 = vadd.f32 %v438, %v485
    %v488 = vmul.f32 %v487, %v172
    %v489 = vtanh.pop %v488
    %v490 = vmul.f32 %v489, %v172
    %v491 = vadd.f32 %v490, %v181
    %v492 = vmul.f32 %v491, %v424
    %v494 = vrot.slane %v491, 2
    %v496 = vmul.f32 %v491, %v494
    %498 = vrot.lane.b32.xlu0 %v496, 64
    %v499 = vpop.permute.xlu0 %498
    %v501 = vadd.f32 %v492, %v499
    %v502 = vtanh.pop %v501
    %503 = vrot.lane.b32.xlu0 %v491, 64
    %v504 = vpop.permute.xlu0 %503
    %v505 = vrot.slane %v504, 2
    %508 = vrot.lane.b32.xlu0 %v502, 64
    %v509 = vpop.permute.xlu0 %508
    %v511 = vmul.f32 %v505, %v509
    %s512 = scalar_lea.vmem [#allocation2], 8
    %513 = vst.msk [vmem:[%s512] sm:$0x3] %vm204, %v511
    %s514 = scalar_lea.vmem %s0, 20
    %v515 = vld [vmem:[%s514] sm:$0xf]
    %v517 = vsel %vm117, %v511, 0
    %519 = vmatpush.msra.mxu0 0.0
    %520 = vmatpush.msra.mxu0 0.0
    %521 = vmatpush.msra.mxu0 0.0
    %522 = vmatpush.msra.mxu0 0.0
    %523 = vmatpush.msra.mxu0 0.0
    %524 = vmatpush.msra.mxu0 0.0
    %525 = vmatpush.msra.mxu0 0.0
    %526 = vmatpush.msra.mxu0 0.0
    %527 = vmatpush.msra.mxu0 %v98
    %528 = vmatpush.msra.mxu0 %v96
    %529 = vmatpush.msra.mxu0 %v94
    %530 = vmatpush.msra.mxu0 %v92
    %531 = vmatpush.msra.mxu0 %v90
    %532 = vmatpush.msra.mxu0 %v88
    %533 = vmatpush.msra.mxu0 %v86
    %534 = vmatpush.msra.mxu0 %v84
    %535 = vmatmul.f32.gmra.mxu0 %v517
    %v536 = vpop.f32.mrf.mxu0
    %v537 = vadd.f32 0.0, %v536
    %538 = vdwg.mxu0
    %539 = vmatpush.msra.mxu0 0.0
    %540 = vmatpush.msra.mxu0 0.0
    %541 = vmatpush.msra.mxu0 0.0
    %542 = vmatpush.msra.mxu0 0.0
    %543 = vmatpush.msra.mxu0 0.0
    %544 = vmatpush.msra.mxu0 0.0
    %545 = vmatpush.msra.mxu0 0.0
    %546 = vmatpush.msra.mxu0 0.0
    %547 = vmatpush.msra.mxu0 %v99
    %548 = vmatpush.msra.mxu0 %v97
    %549 = vmatpush.msra.mxu0 %v95
    %550 = vmatpush.msra.mxu0 %v93
    %551 = vmatpush.msra.mxu0 %v91
    %552 = vmatpush.msra.mxu0 %v89
    %553 = vmatpush.msra.mxu0 %v87
    %554 = vmatpush.msra.mxu0 %v85
    %555 = vmatmul.f32.gmra.mxu0 %v517
    %v556 = vpop.f32.mrf.mxu0
    %v557 = vadd.f32 0.0, %v556
    %558 = vdwg.mxu0
    %v561 = vrot.slane %v557, 6
    %v562 = vsel %vm164, %v537, %v561
    %v564 = vadd.f32 %v515, %v562
    %v565 = vmul.f32 %v564, %v172
    %v566 = vtanh.pop %v565
    %v567 = vmul.f32 %v566, %v172
    %v568 = vadd.f32 %v567, %v181
    %v569 = vmul.f32 %v568, %v501
    %v571 = vrot.slane %v568, 2
    %v573 = vmul.f32 %v568, %v571
    %575 = vrot.lane.b32.xlu0 %v573, 64
    %v576 = vpop.permute.xlu0 %575
    %v578 = vadd.f32 %v569, %v576
    %v579 = vtanh.pop %v578
    %580 = vrot.lane.b32.xlu0 %v568, 64
    %v581 = vpop.permute.xlu0 %580
    %v582 = vrot.slane %v581, 2
    %585 = vrot.lane.b32.xlu0 %v579, 64
    %v586 = vpop.permute.xlu0 %585
    %v588 = vmul.f32 %v582, %v586
    %s589 = scalar_lea.vmem [#allocation2], 10
    %590 = vst.msk [vmem:[%s589] sm:$0x3] %vm204, %v588
    %s591 = scalar_lea.vmem %s0, 24
    %v592 = vld [vmem:[%s591] sm:$0xf]
    %v594 = vsel %vm117, %v588, 0
    %596 = vmatpush.msra.mxu0 0.0
    %597 = vmatpush.msra.mxu0 0.0
    %598 = vmatpush.msra.mxu0 0.0
    %599 = vmatpush.msra.mxu0 0.0
    %600 = vmatpush.msra.mxu0 0.0
    %601 = vmatpush.msra.mxu0 0.0
    %602 = vmatpush.msra.mxu0 0.0
    %603 = vmatpush.msra.mxu0 0.0
    %604 = vmatpush.msra.mxu0 %v98
    %605 = vmatpush.msra.mxu0 %v96
    %606 = vmatpush.msra.mxu0 %v94
    %607 = vmatpush.msra.mxu0 %v92
    %608 = vmatpush.msra.mxu0 %v90
    %609 = vmatpush.msra.mxu0 %v88
    %610 = vmatpush.msra.mxu0 %v86
    %611 = vmatpush.msra.mxu0 %v84
    %612 = vmatmul.f32.gmra.mxu0 %v594
    %v613 = vpop.f32.mrf.mxu0
    %v614 = vadd.f32 0.0, %v613
    %615 = vdwg.mxu0
    %616 = vmatpush.msra.mxu0 0.0
    %617 = vmatpush.msra.mxu0 0.0
    %618 = vmatpush.msra.mxu0 0.0
    %619 = vmatpush.msra.mxu0 0.0
    %620 = vmatpush.msra.mxu0 0.0
    %621 = vmatpush.msra.mxu0 0.0
    %622 = vmatpush.msra.mxu0 0.0
    %623 = vmatpush.msra.mxu0 0.0
    %624 = vmatpush.msra.mxu0 %v99
    %625 = vmatpush.msra.mxu0 %v97
    %626 = vmatpush.msra.mxu0 %v95
    %627 = vmatpush.msra.mxu0 %v93
    %628 = vmatpush.msra.mxu0 %v91
    %629 = vmatpush.msra.mxu0 %v89
    %630 = vmatpush.msra.mxu0 %v87
    %631 = vmatpush.msra.mxu0 %v85
    %632 = vmatmul.f32.gmra.mxu0 %v594
    %v633 = vpop.f32.mrf.mxu0
    %v634 = vadd.f32 0.0, %v633
    %635 = vdwg.mxu0
    %v638 = vrot.slane %v634, 6
    %v639 = vsel %vm164, %v614, %v638
    %v641 = vadd.f32 %v592, %v639
    %v642 = vmul.f32 %v641, %v172
    %v643 = vtanh.pop %v642
    %v644 = vmul.f32 %v643, %v172
    %v645 = vadd.f32 %v644, %v181
    %v646 = vmul.f32 %v645, %v578
    %v648 = vrot.slane %v645, 2
    %v650 = vmul.f32 %v645, %v648
    %652 = vrot.lane.b32.xlu0 %v650, 64
    %v653 = vpop.permute.xlu0 %652
    %v655 = vadd.f32 %v646, %v653
    %v656 = vtanh.pop %v655
    %657 = vrot.lane.b32.xlu0 %v645, 64
    %v658 = vpop.permute.xlu0 %657
    %v659 = vrot.slane %v658, 2
    %662 = vrot.lane.b32.xlu0 %v656, 64
    %v663 = vpop.permute.xlu0 %662
    %v665 = vmul.f32 %v659, %v663
    %s666 = scalar_lea.vmem [#allocation2], 12
    %667 = vst.msk [vmem:[%s666] sm:$0x3] %vm204, %v665
    %s668 = scalar_lea.vmem %s0, 28
    %v669 = vld [vmem:[%s668] sm:$0xf]
    %v671 = vsel %vm117, %v665, 0
    %673 = vmatpush.msra.mxu0 0.0
    %674 = vmatpush.msra.mxu0 0.0
    %675 = vmatpush.msra.mxu0 0.0
    %676 = vmatpush.msra.mxu0 0.0
    %677 = vmatpush.msra.mxu0 0.0
    %678 = vmatpush.msra.mxu0 0.0
    %679 = vmatpush.msra.mxu0 0.0
    %680 = vmatpush.msra.mxu0 0.0
    %681 = vmatpush.msra.mxu0 %v98
    %682 = vmatpush.msra.mxu0 %v96
    %683 = vmatpush.msra.mxu0 %v94
    %684 = vmatpush.msra.mxu0 %v92
    %685 = vmatpush.msra.mxu0 %v90
    %686 = vmatpush.msra.mxu0 %v88
    %687 = vmatpush.msra.mxu0 %v86
    %688 = vmatpush.msra.mxu0 %v84
    %689 = vmatmul.f32.gmra.mxu0 %v671
    %v690 = vpop.f32.mrf.mxu0
    %v691 = vadd.f32 0.0, %v690
    %692 = vdwg.mxu0
    %693 = vmatpush.msra.mxu0 0.0
    %694 = vmatpush.msra.mxu0 0.0
    %695 = vmatpush.msra.mxu0 0.0
    %696 = vmatpush.msra.mxu0 0.0
    %697 = vmatpush.msra.mxu0 0.0
    %698 = vmatpush.msra.mxu0 0.0
    %699 = vmatpush.msra.mxu0 0.0
    %700 = vmatpush.msra.mxu0 0.0
    %701 = vmatpush.msra.mxu0 %v99
    %702 = vmatpush.msra.mxu0 %v97
    %703 = vmatpush.msra.mxu0 %v95
    %704 = vmatpush.msra.mxu0 %v93
    %705 = vmatpush.msra.mxu0 %v91
    %706 = vmatpush.msra.mxu0 %v89
    %707 = vmatpush.msra.mxu0 %v87
    %708 = vmatpush.msra.mxu0 %v85
    %709 = vmatmul.f32.gmra.mxu0 %v671
    %v710 = vpop.f32.mrf.mxu0
    %v711 = vadd.f32 0.0, %v710
    %712 = vdwg.mxu0
    %v715 = vrot.slane %v711, 6
    %v716 = vsel %vm164, %v691, %v715
    %v718 = vadd.f32 %v669, %v716
    %v719 = vmul.f32 %v718, %v172
    %v720 = vtanh.pop %v719
    %v721 = vmul.f32 %v720, %v172
    %v722 = vadd.f32 %v721, %v181
    %v723 = vmul.f32 %v722, %v655
    %v725 = vrot.slane %v722, 2
    %v727 = vmul.f32 %v722, %v725
    %729 = vrot.lane.b32.xlu0 %v727, 64
    %v730 = vpop.permute.xlu0 %729
    %v732 = vadd.f32 %v723, %v730
    %v733 = vtanh.pop %v732
    %734 = vrot.lane.b32.xlu0 %v722, 64
    %v735 = vpop.permute.xlu0 %734
    %v736 = vrot.slane %v735, 2
    %739 = vrot.lane.b32.xlu0 %v733, 64
    %v740 = vpop.permute.xlu0 %739
    %v742 = vmul.f32 %v736, %v740
    %s743 = scalar_lea.vmem [#allocation2], 14
    %744 = vst.msk [vmem:[%s743] sm:$0x3] %vm204, %v742
    %v745 = vld [vmem:[#allocation2] sm:$0x3]
    %v746 = vld [vmem:[#allocation2 + $0x2] sm:$0x3]
    %v747 = vld [vmem:[#allocation2 + $0x4] sm:$0x3]
    %v748 = vld [vmem:[#allocation2 + $0x6] sm:$0x3]
    %v749 = vld [vmem:[#allocation2 + $0x8] sm:$0x3]
    %v750 = vld [vmem:[#allocation2 + $0xa] sm:$0x3]
    %v751 = vld [vmem:[#allocation2 + $0xc] sm:$0x3]
    %v752 = vld [vmem:[#allocation2 + $0xe] sm:$0x3]
    %v753 = vld [vmem:[#allocation5] sm:$0xff]
    %v754 = vld [vmem:[#allocation5 + $0x8] sm:$0xff]
    %v755 = vld [vmem:[#allocation5 + $0x10] sm:$0xff]
    %v756 = vld [vmem:[#allocation5 + $0x18] sm:$0xff]
    %v757 = vld [vmem:[#allocation5 + $0x20] sm:$0xff]
    %v758 = vld [vmem:[#allocation5 + $0x28] sm:$0xff]
    %v759 = vld [vmem:[#allocation5 + $0x30] sm:$0xff]
    %v760 = vld [vmem:[#allocation5 + $0x38] sm:$0xff]
    %v761 = vld [vmem:[#allocation5 + $0x40] sm:$0xff]
    %v762 = vld [vmem:[#allocation5 + $0x48] sm:$0xff]
    %v763 = vld [vmem:[#allocation5 + $0x50] sm:$0xff]
    %v764 = vld [vmem:[#allocation5 + $0x58] sm:$0xff]
    %v765 = vld [vmem:[#allocation5 + $0x60] sm:$0xff]
    %v766 = vld [vmem:[#allocation5 + $0x68] sm:$0xff]
    %v767 = vld [vmem:[#allocation5 + $0x70] sm:$0xff]
    %v768 = vld [vmem:[#allocation5 + $0x78] sm:$0xff]
    %v769 = vld [vmem:[%s4] sm:$0x3]
    %v771 = vperm.slane %v769, 0
    %v772 = vperm.slane %v769, 1
    %v773 = vrot.slane %v772, 6
    %v774 = vsel %vm164, %v771, %v773
    %783 = vst [vmem:[#allocation1] ss:$4 sm:$0xff] %v745
    %s784 = scalar_lea.vmem [#allocation1], 1
    %785 = vst [vmem:[%s784] ss:$4 sm:$0xff] %v746
    %s786 = scalar_lea.vmem [#allocation1], 2
    %787 = vst [vmem:[%s786] ss:$4 sm:$0xff] %v747
    %s788 = scalar_lea.vmem [#allocation1], 3
    %789 = vst [vmem:[%s788] ss:$4 sm:$0xff] %v748
    %s790 = scalar_lea.vmem [#allocation1], 32
    %791 = vst [vmem:[%s790] ss:$4 sm:$0xff] %v749
    %s792 = scalar_lea.vmem [#allocation1], 33
    %793 = vst [vmem:[%s792] ss:$4 sm:$0xff] %v750
    %s794 = scalar_lea.vmem [#allocation1], 34
    %795 = vst [vmem:[%s794] ss:$4 sm:$0xff] %v751
    %s796 = scalar_lea.vmem [#allocation1], 35
    %797 = vst [vmem:[%s796] ss:$4 sm:$0xff] %v752
    %v798 = vld.sshfl [vmem:[#allocation1] sm:$0xff pattern:$0x73625140]
    %v799 = vld.sshfl [vmem:[#allocation1 + $0x20] sm:$0xff pattern:$0x73625140]
    %800 = vst [vmem:[#allocation1] ss:$4 sm:$0xff] %v774
    %s801 = scalar_lea.vmem [#allocation1], 1
    %802 = vst [vmem:[%s801] ss:$4 sm:$0xff] %v774
    %s803 = scalar_lea.vmem [#allocation1], 2
    %804 = vst [vmem:[%s803] ss:$4 sm:$0xff] %v774
    %s805 = scalar_lea.vmem [#allocation1], 3
    %806 = vst [vmem:[%s805] ss:$4 sm:$0xff] %v774
    %s807 = scalar_lea.vmem [#allocation1], 32
    %808 = vst [vmem:[%s807] ss:$4 sm:$0xff] %v774
    %s809 = scalar_lea.vmem [#allocation1], 33
    %810 = vst [vmem:[%s809] ss:$4 sm:$0xff] %v774
    %s811 = scalar_lea.vmem [#allocation1], 34
    %812 = vst [vmem:[%s811] ss:$4 sm:$0xff] %v774
    %s813 = scalar_lea.vmem [#allocation1], 35
    %814 = vst [vmem:[%s813] ss:$4 sm:$0xff] %v774
    %v815 = vld.sshfl [vmem:[#allocation1] sm:$0xff pattern:$0x73625140]
    %v816 = vld.sshfl [vmem:[#allocation1 + $0x8] sm:$0xff pattern:$0x73625140]
    %v817 = vld.sshfl [vmem:[#allocation1 + $0x20] sm:$0xff pattern:$0x73625140]
    %v818 = vld.sshfl [vmem:[#allocation1 + $0x28] sm:$0xff pattern:$0x73625140]
    %v823 = vsel %vm117, %v798, 0
    %v825 = vsel %vm117, %v799, 0
    %827 = vmatpush.msra.mxu0 0.0
    %828 = vmatpush.msra.mxu0 0.0
    %829 = vmatpush.msra.mxu0 0.0
    %830 = vmatpush.msra.mxu0 0.0
    %831 = vmatpush.msra.mxu0 0.0
    %832 = vmatpush.msra.mxu0 0.0
    %833 = vmatpush.msra.mxu0 0.0
    %834 = vmatpush.msra.mxu0 0.0
    %835 = vmatpush.msra.mxu0 %v767
    %836 = vmatpush.msra.mxu0 %v765
    %837 = vmatpush.msra.mxu0 %v763
    %838 = vmatpush.msra.mxu0 %v761
    %839 = vmatpush.msra.mxu0 %v759
    %840 = vmatpush.msra.mxu0 %v757
    %841 = vmatpush.msra.mxu0 %v755
    %842 = vmatpush.msra.mxu0 %v753
    %843 = vmatmul.f32.gmra.mxu0 %v823
    %v844 = vpop.f32.mrf.mxu0
    %v845 = vadd.f32 %v815, %v844
    %846 = vmatmul.f32.gmra.mxu0 %v825
    %v847 = vpop.f32.mrf.mxu0
    %v848 = vadd.f32 %v817, %v847
    %849 = vdwg.mxu0
    %850 = vmatpush.msra.mxu0 0.0
    %851 = vmatpush.msra.mxu0 0.0
    %852 = vmatpush.msra.mxu0 0.0
    %853 = vmatpush.msra.mxu0 0.0
    %854 = vmatpush.msra.mxu0 0.0
    %855 = vmatpush.msra.mxu0 0.0
    %856 = vmatpush.msra.mxu0 0.0
    %857 = vmatpush.msra.mxu0 0.0
    %858 = vmatpush.msra.mxu0 %v768
    %859 = vmatpush.msra.mxu0 %v766
    %860 = vmatpush.msra.mxu0 %v764
    %861 = vmatpush.msra.mxu0 %v762
    %862 = vmatpush.msra.mxu0 %v760
    %863 = vmatpush.msra.mxu0 %v758
    %864 = vmatpush.msra.mxu0 %v756
    %865 = vmatpush.msra.mxu0 %v754
    %866 = vmatmul.f32.gmra.mxu0 %v823
    %v867 = vpop.f32.mrf.mxu0
    %v868 = vadd.f32 %v816, %v867
    %869 = vmatmul.f32.gmra.mxu0 %v825
    %v870 = vpop.f32.mrf.mxu0
    %v871 = vadd.f32 %v818, %v870
    %872 = vdwg.mxu0
    %v877 = vrot.slane %v868, 6
    %v878 = vrot.slane %v871, 6
    %v879 = vsel %vm164, %v845, %v877
    %vm880 = vcmask 1043458
    %v881 = vsel %vm880, %v845, %v877
    %v882 = vrot.slane %v881, 2
    %vm883 = vcmask 1045508
    %v884 = vsel %vm883, %v845, %v877
    %v885 = vrot.slane %v884, 4
    %vm886 = vcmask 1045504
    %v887 = vsel %vm886, %v877, %v845
    %v888 = vrot.slane %v887, 6
    %v889 = vsel %vm164, %v848, %v878
    %v890 = vsel %vm880, %v848, %v878
    %v891 = vrot.slane %v890, 2
    %v892 = vsel %vm883, %v848, %v878
    %v893 = vrot.slane %v892, 4
    %v894 = vsel %vm886, %v878, %v848
    %v895 = vrot.slane %v894, 6
    %904 = vst [vmem:[#allocation4] sm:$0xf] %v879
    %905 = vst [vmem:[#allocation4 + $0x4] sm:$0xf] %v882
    %906 = vst [vmem:[#allocation4 + $0x8] sm:$0xf] %v885
    %907 = vst [vmem:[#allocation4 + $0xc] sm:$0xf] %v888
    %908 = vst [vmem:[#allocation4 + $0x10] sm:$0xf] %v889
    %909 = vst [vmem:[#allocation4 + $0x14] sm:$0xf] %v891
    %910 = vst [vmem:[#allocation4 + $0x18] sm:$0xf] %v893
    %911 = vst [vmem:[#allocation4 + $0x1c] sm:$0xf] %v895
    %v912 = vld [vmem:[#allocation4] sm:$0xf]
    %913 = vmatpush.msra.mxu0 0.0
    %914 = vmatpush.msra.mxu0 0.0
    %915 = vmatpush.msra.mxu0 0.0
    %916 = vmatpush.msra.mxu0 0.0
    %917 = vmatpush.msra.mxu0 0.0
    %918 = vmatpush.msra.mxu0 0.0
    %919 = vmatpush.msra.mxu0 0.0
    %920 = vmatpush.msra.mxu0 0.0
    %921 = vmatpush.msra.mxu0 %v114
    %922 = vmatpush.msra.mxu0 %v112
    %923 = vmatpush.msra.mxu0 %v110
    %924 = vmatpush.msra.mxu0 %v108
    %925 = vmatpush.msra.mxu0 %v106
    %926 = vmatpush.msra.mxu0 %v104
    %927 = vmatpush.msra.mxu0 %v102
    %928 = vmatpush.msra.mxu0 %v100
    %929 = vmatmul.f32.gmra.mxu0 %v119
    %v930 = vpop.f32.mrf.mxu0
    %v931 = vadd.f32 0.0, %v930
    %932 = vdwg.mxu0
    %933 = vmatpush.msra.mxu0 0.0
    %934 = vmatpush.msra.mxu0 0.0
    %935 = vmatpush.msra.mxu0 0.0
    %936 = vmatpush.msra.mxu0 0.0
    %937 = vmatpush.msra.mxu0 0.0
    %938 = vmatpush.msra.mxu0 0.0
    %939 = vmatpush.msra.mxu0 0.0
    %940 = vmatpush.msra.mxu0 0.0
    %941 = vmatpush.msra.mxu0 %v115
    %942 = vmatpush.msra.mxu0 %v113
    %943 = vmatpush.msra.mxu0 %v111
    %944 = vmatpush.msra.mxu0 %v109
    %945 = vmatpush.msra.mxu0 %v107
    %946 = vmatpush.msra.mxu0 %v105
    %947 = vmatpush.msra.mxu0 %v103
    %948 = vmatpush.msra.mxu0 %v101
    %949 = vmatmul.f32.gmra.mxu0 %v119
    %v950 = vpop.f32.mrf.mxu0
    %v951 = vadd.f32 0.0, %v950
    %952 = vdwg.mxu0
    %v955 = vrot.slane %v951, 6
    %v956 = vsel %vm164, %v931, %v955
    %v958 = vadd.f32 %v912, %v956
    %v959 = vmul.f32 %v958, %v172
    %v960 = vtanh.pop %v959
    %v961 = vmul.f32 %v960, %v172
    %v962 = vadd.f32 %v961, %v181
    %v963 = vmul.f32 %v962, 0.0
    %v965 = vrot.slane %v962, 2
    %v967 = vmul.f32 %v962, %v965
    %969 = vrot.lane.b32.xlu0 %v967, 64
    %v970 = vpop.permute.xlu0 %969
    %v972 = vadd.f32 %v963, %v970
    %v973 = vtanh.pop %v972
    %974 = vrot.lane.b32.xlu0 %v962, 64
    %v975 = vpop.permute.xlu0 %974
    %v976 = vrot.slane %v975, 2
    %979 = vrot.lane.b32.xlu0 %v973, 64
    %v980 = vpop.permute.xlu0 %979
    %v982 = vmul.f32 %v976, %v980
    %983 = vst.msk [vmem:[#allocation3] sm:$0x3] %vm204, %v982
    %s984 = scalar_lea.vmem [#allocation4], 4
    %v985 = vld [vmem:[%s984] sm:$0xf]
    %v987 = vsel %vm117, %v982, 0
    %989 = vmatpush.msra.mxu0 0.0
    %990 = vmatpush.msra.mxu0 0.0
    %991 = vmatpush.msra.mxu0 0.0
    %992 = vmatpush.msra.mxu0 0.0
    %993 = vmatpush.msra.mxu0 0.0
    %994 = vmatpush.msra.mxu0 0.0
    %995 = vmatpush.msra.mxu0 0.0
    %996 = vmatpush.msra.mxu0 0.0
    %997 = vmatpush.msra.mxu0 %v114
    %998 = vmatpush.msra.mxu0 %v112
    %999 = vmatpush.msra.mxu0 %v110
    %1000 = vmatpush.msra.mxu0 %v108
    %1001 = vmatpush.msra.mxu0 %v106
    %1002 = vmatpush.msra.mxu0 %v104
    %1003 = vmatpush.msra.mxu0 %v102
    %1004 = vmatpush.msra.mxu0 %v100
    %1005 = vmatmul.f32.gmra.mxu0 %v987
    %v1006 = vpop.f32.mrf.mxu0
    %v1007 = vadd.f32 0.0, %v1006
    %1008 = vdwg.mxu0
    %1009 = vmatpush.msra.mxu0 0.0
    %1010 = vmatpush.msra.mxu0 0.0
    %1011 = vmatpush.msra.mxu0 0.0
    %1012 = vmatpush.msra.mxu0 0.0
    %1013 = vmatpush.msra.mxu0 0.0
    %1014 = vmatpush.msra.mxu0 0.0
    %1015 = vmatpush.msra.mxu0 0.0
    %1016 = vmatpush.msra.mxu0 0.0
    %1017 = vmatpush.msra.mxu0 %v115
    %1018 = vmatpush.msra.mxu0 %v113
    %1019 = vmatpush.msra.mxu0 %v111
    %1020 = vmatpush.msra.mxu0 %v109
    %1021 = vmatpush.msra.mxu0 %v107
    %1022 = vmatpush.msra.mxu0 %v105
    %1023 = vmatpush.msra.mxu0 %v103
    %1024 = vmatpush.msra.mxu0 %v101
    %1025 = vmatmul.f32.gmra.mxu0 %v987
    %v1026 = vpop.f32.mrf.mxu0
    %v1027 = vadd.f32 0.0, %v1026
    %1028 = vdwg.mxu0
    %v1031 = vrot.slane %v1027, 6
    %v1032 = vsel %vm164, %v1007, %v1031
    %v1034 = vadd.f32 %v985, %v1032
    %v1035 = vmul.f32 %v1034, %v172
    %v1036 = vtanh.pop %v1035
    %v1037 = vmul.f32 %v1036, %v172
    %v1038 = vadd.f32 %v1037, %v181
    %v1039 = vmul.f32 %v1038, %v972
    %v1041 = vrot.slane %v1038, 2
    %v1043 = vmul.f32 %v1038, %v1041
    %1045 = vrot.lane.b32.xlu0 %v1043, 64
    %v1046 = vpop.permute.xlu0 %1045
    %v1048 = vadd.f32 %v1039, %v1046
    %v1049 = vtanh.pop %v1048
    %1050 = vrot.lane.b32.xlu0 %v1038, 64
    %v1051 = vpop.permute.xlu0 %1050
    %v1052 = vrot.slane %v1051, 2
    %1055 = vrot.lane.b32.xlu0 %v1049, 64
    %v1056 = vpop.permute.xlu0 %1055
    %v1058 = vmul.f32 %v1052, %v1056
    %s1059 = scalar_lea.vmem [#allocation3], 2
    %1060 = vst.msk [vmem:[%s1059] sm:$0x3] %vm204, %v1058
    %s1061 = scalar_lea.vmem [#allocation4], 8
    %v1062 = vld [vmem:[%s1061] sm:$0xf]
    %v1064 = vsel %vm117, %v1058, 0
    %1066 = vmatpush.msra.mxu0 0.0
    %1067 = vmatpush.msra.mxu0 0.0
    %1068 = vmatpush.msra.mxu0 0.0
    %1069 = vmatpush.msra.mxu0 0.0
    %1070 = vmatpush.msra.mxu0 0.0
    %1071 = vmatpush.msra.mxu0 0.0
    %1072 = vmatpush.msra.mxu0 0.0
    %1073 = vmatpush.msra.mxu0 0.0
    %1074 = vmatpush.msra.mxu0 %v114
    %1075 = vmatpush.msra.mxu0 %v112
    %1076 = vmatpush.msra.mxu0 %v110
    %1077 = vmatpush.msra.mxu0 %v108
    %1078 = vmatpush.msra.mxu0 %v106
    %1079 = vmatpush.msra.mxu0 %v104
    %1080 = vmatpush.msra.mxu0 %v102
    %1081 = vmatpush.msra.mxu0 %v100
    %1082 = vmatmul.f32.gmra.mxu0 %v1064
    %v1083 = vpop.f32.mrf.mxu0
    %v1084 = vadd.f32 0.0, %v1083
    %1085 = vdwg.mxu0
    %1086 = vmatpush.msra.mxu0 0.0
    %1087 = vmatpush.msra.mxu0 0.0
    %1088 = vmatpush.msra.mxu0 0.0
    %1089 = vmatpush.msra.mxu0 0.0
    %1090 = vmatpush.msra.mxu0 0.0
    %1091 = vmatpush.msra.mxu0 0.0
    %1092 = vmatpush.msra.mxu0 0.0
    %1093 = vmatpush.msra.mxu0 0.0
    %1094 = vmatpush.msra.mxu0 %v115
    %1095 = vmatpush.msra.mxu0 %v113
    %1096 = vmatpush.msra.mxu0 %v111
    %1097 = vmatpush.msra.mxu0 %v109
    %1098 = vmatpush.msra.mxu0 %v107
    %1099 = vmatpush.msra.mxu0 %v105
    %1100 = vmatpush.msra.mxu0 %v103
    %1101 = vmatpush.msra.mxu0 %v101
    %1102 = vmatmul.f32.gmra.mxu0 %v1064
    %v1103 = vpop.f32.mrf.mxu0
    %v1104 = vadd.f32 0.0, %v1103
    %1105 = vdwg.mxu0
    %v1108 = vrot.slane %v1104, 6
    %v1109 = vsel %vm164, %v1084, %v1108
    %v1111 = vadd.f32 %v1062, %v1109
    %v1112 = vmul.f32 %v1111, %v172
    %v1113 = vtanh.pop %v1112
    %v1114 = vmul.f32 %v1113, %v172
    %v1115 = vadd.f32 %v1114, %v181
    %v1116 = vmul.f32 %v1115, %v1048
    %v1118 = vrot.slane %v1115, 2
    %v1120 = vmul.f32 %v1115, %v1118
    %1122 = vrot.lane.b32.xlu0 %v1120, 64
    %v1123 = vpop.permute.xlu0 %1122
    %v1125 = vadd.f32 %v1116, %v1123
    %v1126 = vtanh.pop %v1125
    %1127 = vrot.lane.b32.xlu0 %v1115, 64
    %v1128 = vpop.permute.xlu0 %1127
    %v1129 = vrot.slane %v1128, 2
    %1132 = vrot.lane.b32.xlu0 %v1126, 64
    %v1133 = vpop.permute.xlu0 %1132
    %v1135 = vmul.f32 %v1129, %v1133
    %s1136 = scalar_lea.vmem [#allocation3], 4
    %1137 = vst.msk [vmem:[%s1136] sm:$0x3] %vm204, %v1135
    %s1138 = scalar_lea.vmem [#allocation4], 12
    %v1139 = vld [vmem:[%s1138] sm:$0xf]
    %v1141 = vsel %vm117, %v1135, 0
    %1143 = vmatpush.msra.mxu0 0.0
    %1144 = vmatpush.msra.mxu0 0.0
    %1145 = vmatpush.msra.mxu0 0.0
    %1146 = vmatpush.msra.mxu0 0.0
    %1147 = vmatpush.msra.mxu0 0.0
    %1148 = vmatpush.msra.mxu0 0.0
    %1149 = vmatpush.msra.mxu0 0.0
    %1150 = vmatpush.msra.mxu0 0.0
    %1151 = vmatpush.msra.mxu0 %v114
    %1152 = vmatpush.msra.mxu0 %v112
    %1153 = vmatpush.msra.mxu0 %v110
    %1154 = vmatpush.msra.mxu0 %v108
    %1155 = vmatpush.msra.mxu0 %v106
    %1156 = vmatpush.msra.mxu0 %v104
    %1157 = vmatpush.msra.mxu0 %v102
    %1158 = vmatpush.msra.mxu0 %v100
    %1159 = vmatmul.f32.gmra.mxu0 %v1141
    %v1160 = vpop.f32.mrf.mxu0
    %v1161 = vadd.f32 0.0, %v1160
    %1162 = vdwg.mxu0
    %1163 = vmatpush.msra.mxu0 0.0
    %1164 = vmatpush.msra.mxu0 0.0
    %1165 = vmatpush.msra.mxu0 0.0
    %1166 = vmatpush.msra.mxu0 0.0
    %1167 = vmatpush.msra.mxu0 0.0
    %1168 = vmatpush.msra.mxu0 0.0
    %1169 = vmatpush.msra.mxu0 0.0
    %1170 = vmatpush.msra.mxu0 0.0
    %1171 = vmatpush.msra.mxu0 %v115
    %1172 = vmatpush.msra.mxu0 %v113
    %1173 = vmatpush.msra.mxu0 %v111
    %1174 = vmatpush.msra.mxu0 %v109
    %1175 = vmatpush.msra.mxu0 %v107
    %1176 = vmatpush.msra.mxu0 %v105
    %1177 = vmatpush.msra.mxu0 %v103
    %1178 = vmatpush.msra.mxu0 %v101
    %1179 = vmatmul.f32.gmra.mxu0 %v1141
    %v1180 = vpop.f32.mrf.mxu0
    %v1181 = vadd.f32 0.0, %v1180
    %1182 = vdwg.mxu0
    %v1185 = vrot.slane %v1181, 6
    %v1186 = vsel %vm164, %v1161, %v1185
    %v1188 = vadd.f32 %v1139, %v1186
    %v1189 = vmul.f32 %v1188, %v172
    %v1190 = vtanh.pop %v1189
    %v1191 = vmul.f32 %v1190, %v172
    %v1192 = vadd.f32 %v1191, %v181
    %v1193 = vmul.f32 %v1192, %v1125
    %v1195 = vrot.slane %v1192, 2
    %v1197 = vmul.f32 %v1192, %v1195
    %1199 = vrot.lane.b32.xlu0 %v1197, 64
    %v1200 = vpop.permute.xlu0 %1199
    %v1202 = vadd.f32 %v1193, %v1200
    %v1203 = vtanh.pop %v1202
    %1204 = vrot.lane.b32.xlu0 %v1192, 64
    %v1205 = vpop.permute.xlu0 %1204
    %v1206 = vrot.slane %v1205, 2
    %1209 = vrot.lane.b32.xlu0 %v1203, 64
    %v1210 = vpop.permute.xlu0 %1209
    %v1212 = vmul.f32 %v1206, %v1210
    %s1213 = scalar_lea.vmem [#allocation3], 6
    %1214 = vst.msk [vmem:[%s1213] sm:$0x3] %vm204, %v1212
    %s1215 = scalar_lea.vmem [#allocation4], 16
    %v1216 = vld [vmem:[%s1215] sm:$0xf]
    %v1218 = vsel %vm117, %v1212, 0
    %1220 = vmatpush.msra.mxu0 0.0
    %1221 = vmatpush.msra.mxu0 0.0
    %1222 = vmatpush.msra.mxu0 0.0
    %1223 = vmatpush.msra.mxu0 0.0
    %1224 = vmatpush.msra.mxu0 0.0
    %1225 = vmatpush.msra.mxu0 0.0
    %1226 = vmatpush.msra.mxu0 0.0
    %1227 = vmatpush.msra.mxu0 0.0
    %1228 = vmatpush.msra.mxu0 %v114
    %1229 = vmatpush.msra.mxu0 %v112
    %1230 = vmatpush.msra.mxu0 %v110
    %1231 = vmatpush.msra.mxu0 %v108
    %1232 = vmatpush.msra.mxu0 %v106
    %1233 = vmatpush.msra.mxu0 %v104
    %1234 = vmatpush.msra.mxu0 %v102
    %1235 = vmatpush.msra.mxu0 %v100
    %1236 = vmatmul.f32.gmra.mxu0 %v1218
    %v1237 = vpop.f32.mrf.mxu0
    %v1238 = vadd.f32 0.0, %v1237
    %1239 = vdwg.mxu0
    %1240 = vmatpush.msra.mxu0 0.0
    %1241 = vmatpush.msra.mxu0 0.0
    %1242 = vmatpush.msra.mxu0 0.0
    %1243 = vmatpush.msra.mxu0 0.0
    %1244 = vmatpush.msra.mxu0 0.0
    %1245 = vmatpush.msra.mxu0 0.0
    %1246 = vmatpush.msra.mxu0 0.0
    %1247 = vmatpush.msra.mxu0 0.0
    %1248 = vmatpush.msra.mxu0 %v115
    %1249 = vmatpush.msra.mxu0 %v113
    %1250 = vmatpush.msra.mxu0 %v111
    %1251 = vmatpush.msra.mxu0 %v109
    %1252 = vmatpush.msra.mxu0 %v107
    %1253 = vmatpush.msra.mxu0 %v105
    %1254 = vmatpush.msra.mxu0 %v103
    %1255 = vmatpush.msra.mxu0 %v101
    %1256 = vmatmul.f32.gmra.mxu0 %v1218
    %v1257 = vpop.f32.mrf.mxu0
    %v1258 = vadd.f32 0.0, %v1257
    %1259 = vdwg.mxu0
    %v1262 = vrot.slane %v1258, 6
    %v1263 = vsel %vm164, %v1238, %v1262
    %v1265 = vadd.f32 %v1216, %v1263
    %v1266 = vmul.f32 %v1265, %v172
    %v1267 = vtanh.pop %v1266
    %v1268 = vmul.f32 %v1267, %v172
    %v1269 = vadd.f32 %v1268, %v181
    %v1270 = vmul.f32 %v1269, %v1202
    %v1272 = vrot.slane %v1269, 2
    %v1274 = vmul.f32 %v1269, %v1272
    %1276 = vrot.lane.b32.xlu0 %v1274, 64
    %v1277 = vpop.permute.xlu0 %1276
    %v1279 = vadd.f32 %v1270, %v1277
    %v1280 = vtanh.pop %v1279
    %1281 = vrot.lane.b32.xlu0 %v1269, 64
    %v1282 = vpop.permute.xlu0 %1281
    %v1283 = vrot.slane %v1282, 2
    %1286 = vrot.lane.b32.xlu0 %v1280, 64
    %v1287 = vpop.permute.xlu0 %1286
    %v1289 = vmul.f32 %v1283, %v1287
    %s1290 = scalar_lea.vmem [#allocation3], 8
    %1291 = vst.msk [vmem:[%s1290] sm:$0x3] %vm204, %v1289
    %s1292 = scalar_lea.vmem [#allocation4], 20
    %v1293 = vld [vmem:[%s1292] sm:$0xf]
    %v1295 = vsel %vm117, %v1289, 0
    %1297 = vmatpush.msra.mxu0 0.0
    %1298 = vmatpush.msra.mxu0 0.0
    %1299 = vmatpush.msra.mxu0 0.0
    %1300 = vmatpush.msra.mxu0 0.0
    %1301 = vmatpush.msra.mxu0 0.0
    %1302 = vmatpush.msra.mxu0 0.0
    %1303 = vmatpush.msra.mxu0 0.0
    %1304 = vmatpush.msra.mxu0 0.0
    %1305 = vmatpush.msra.mxu0 %v114
    %1306 = vmatpush.msra.mxu0 %v112
    %1307 = vmatpush.msra.mxu0 %v110
    %1308 = vmatpush.msra.mxu0 %v108
    %1309 = vmatpush.msra.mxu0 %v106
    %1310 = vmatpush.msra.mxu0 %v104
    %1311 = vmatpush.msra.mxu0 %v102
    %1312 = vmatpush.msra.mxu0 %v100
    %1313 = vmatmul.f32.gmra.mxu0 %v1295
    %v1314 = vpop.f32.mrf.mxu0
    %v1315 = vadd.f32 0.0, %v1314
    %1316 = vdwg.mxu0
    %1317 = vmatpush.msra.mxu0 0.0
    %1318 = vmatpush.msra.mxu0 0.0
    %1319 = vmatpush.msra.mxu0 0.0
    %1320 = vmatpush.msra.mxu0 0.0
    %1321 = vmatpush.msra.mxu0 0.0
    %1322 = vmatpush.msra.mxu0 0.0
    %1323 = vmatpush.msra.mxu0 0.0
    %1324 = vmatpush.msra.mxu0 0.0
    %1325 = vmatpush.msra.mxu0 %v115
    %1326 = vmatpush.msra.mxu0 %v113
    %1327 = vmatpush.msra.mxu0 %v111
    %1328 = vmatpush.msra.mxu0 %v109
    %1329 = vmatpush.msra.mxu0 %v107
    %1330 = vmatpush.msra.mxu0 %v105
    %1331 = vmatpush.msra.mxu0 %v103
    %1332 = vmatpush.msra.mxu0 %v101
    %1333 = vmatmul.f32.gmra.mxu0 %v1295
    %v1334 = vpop.f32.mrf.mxu0
    %v1335 = vadd.f32 0.0, %v1334
    %1336 = vdwg.mxu0
    %v1339 = vrot.slane %v1335, 6
    %v1340 = vsel %vm164, %v1315, %v1339
    %v1342 = vadd.f32 %v1293, %v1340
    %v1343 = vmul.f32 %v1342, %v172
    %v1344 = vtanh.pop %v1343
    %v1345 = vmul.f32 %v1344, %v172
    %v1346 = vadd.f32 %v1345, %v181
    %v1347 = vmul.f32 %v1346, %v1279
    %v1349 = vrot.slane %v1346, 2
    %v1351 = vmul.f32 %v1346, %v1349
    %1353 = vrot.lane.b32.xlu0 %v1351, 64
    %v1354 = vpop.permute.xlu0 %1353
    %v1356 = vadd.f32 %v1347, %v1354
    %v1357 = vtanh.pop %v1356
    %1358 = vrot.lane.b32.xlu0 %v1346, 64
    %v1359 = vpop.permute.xlu0 %1358
    %v1360 = vrot.slane %v1359, 2
    %1363 = vrot.lane.b32.xlu0 %v1357, 64
    %v1364 = vpop.permute.xlu0 %1363
    %v1366 = vmul.f32 %v1360, %v1364
    %s1367 = scalar_lea.vmem [#allocation3], 10
    %1368 = vst.msk [vmem:[%s1367] sm:$0x3] %vm204, %v1366
    %s1369 = scalar_lea.vmem [#allocation4], 24
    %v1370 = vld [vmem:[%s1369] sm:$0xf]
    %v1372 = vsel %vm117, %v1366, 0
    %1374 = vmatpush.msra.mxu0 0.0
    %1375 = vmatpush.msra.mxu0 0.0
    %1376 = vmatpush.msra.mxu0 0.0
    %1377 = vmatpush.msra.mxu0 0.0
    %1378 = vmatpush.msra.mxu0 0.0
    %1379 = vmatpush.msra.mxu0 0.0
    %1380 = vmatpush.msra.mxu0 0.0
    %1381 = vmatpush.msra.mxu0 0.0
    %1382 = vmatpush.msra.mxu0 %v114
    %1383 = vmatpush.msra.mxu0 %v112
    %1384 = vmatpush.msra.mxu0 %v110
    %1385 = vmatpush.msra.mxu0 %v108
    %1386 = vmatpush.msra.mxu0 %v106
    %1387 = vmatpush.msra.mxu0 %v104
    %1388 = vmatpush.msra.mxu0 %v102
    %1389 = vmatpush.msra.mxu0 %v100
    %1390 = vmatmul.f32.gmra.mxu0 %v1372
    %v1391 = vpop.f32.mrf.mxu0
    %v1392 = vadd.f32 0.0, %v1391
    %1393 = vdwg.mxu0
    %1394 = vmatpush.msra.mxu0 0.0
    %1395 = vmatpush.msra.mxu0 0.0
    %1396 = vmatpush.msra.mxu0 0.0
    %1397 = vmatpush.msra.mxu0 0.0
    %1398 = vmatpush.msra.mxu0 0.0
    %1399 = vmatpush.msra.mxu0 0.0
    %1400 = vmatpush.msra.mxu0 0.0
    %1401 = vmatpush.msra.mxu0 0.0
    %1402 = vmatpush.msra.mxu0 %v115
    %1403 = vmatpush.msra.mxu0 %v113
    %1404 = vmatpush.msra.mxu0 %v111
    %1405 = vmatpush.msra.mxu0 %v109
    %1406 = vmatpush.msra.mxu0 %v107
    %1407 = vmatpush.msra.mxu0 %v105
    %1408 = vmatpush.msra.mxu0 %v103
    %1409 = vmatpush.msra.mxu0 %v101
    %1410 = vmatmul.f32.gmra.mxu0 %v1372
    %v1411 = vpop.f32.mrf.mxu0
    %v1412 = vadd.f32 0.0, %v1411
    %1413 = vdwg.mxu0
    %v1416 = vrot.slane %v1412, 6
    %v1417 = vsel %vm164, %v1392, %v1416
    %v1419 = vadd.f32 %v1370, %v1417
    %v1420 = vmul.f32 %v1419, %v172
    %v1421 = vtanh.pop %v1420
    %v1422 = vmul.f32 %v1421, %v172
    %v1423 = vadd.f32 %v1422, %v181
    %v1424 = vmul.f32 %v1423, %v1356
    %v1426 = vrot.slane %v1423, 2
    %v1428 = vmul.f32 %v1423, %v1426
    %1430 = vrot.lane.b32.xlu0 %v1428, 64
    %v1431 = vpop.permute.xlu0 %1430
    %v1433 = vadd.f32 %v1424, %v1431
    %v1434 = vtanh.pop %v1433
    %1435 = vrot.lane.b32.xlu0 %v1423, 64
    %v1436 = vpop.permute.xlu0 %1435
    %v1437 = vrot.slane %v1436, 2
    %1440 = vrot.lane.b32.xlu0 %v1434, 64
    %v1441 = vpop.permute.xlu0 %1440
    %v1443 = vmul.f32 %v1437, %v1441
    %s1444 = scalar_lea.vmem [#allocation3], 12
    %1445 = vst.msk [vmem:[%s1444] sm:$0x3] %vm204, %v1443
    %s1446 = scalar_lea.vmem [#allocation4], 28
    %v1447 = vld [vmem:[%s1446] sm:$0xf]
    %v1449 = vsel %vm117, %v1443, 0
    %1451 = vmatpush.msra.mxu0 0.0
    %1452 = vmatpush.msra.mxu0 0.0
    %1453 = vmatpush.msra.mxu0 0.0
    %1454 = vmatpush.msra.mxu0 0.0
    %1455 = vmatpush.msra.mxu0 0.0
    %1456 = vmatpush.msra.mxu0 0.0
    %1457 = vmatpush.msra.mxu0 0.0
    %1458 = vmatpush.msra.mxu0 0.0
    %1459 = vmatpush.msra.mxu0 %v114
    %1460 = vmatpush.msra.mxu0 %v112
    %1461 = vmatpush.msra.mxu0 %v110
    %1462 = vmatpush.msra.mxu0 %v108
    %1463 = vmatpush.msra.mxu0 %v106
    %1464 = vmatpush.msra.mxu0 %v104
    %1465 = vmatpush.msra.mxu0 %v102
    %1466 = vmatpush.msra.mxu0 %v100
    %1467 = vmatmul.f32.gmra.mxu0 %v1449
    %v1468 = vpop.f32.mrf.mxu0
    %v1469 = vadd.f32 0.0, %v1468
    %1470 = vdwg.mxu0
    %1471 = vmatpush.msra.mxu0 0.0
    %1472 = vmatpush.msra.mxu0 0.0
    %1473 = vmatpush.msra.mxu0 0.0
    %1474 = vmatpush.msra.mxu0 0.0
    %1475 = vmatpush.msra.mxu0 0.0
    %1476 = vmatpush.msra.mxu0 0.0
    %1477 = vmatpush.msra.mxu0 0.0
    %1478 = vmatpush.msra.mxu0 0.0
    %1479 = vmatpush.msra.mxu0 %v115
    %1480 = vmatpush.msra.mxu0 %v113
    %1481 = vmatpush.msra.mxu0 %v111
    %1482 = vmatpush.msra.mxu0 %v109
    %1483 = vmatpush.msra.mxu0 %v107
    %1484 = vmatpush.msra.mxu0 %v105
    %1485 = vmatpush.msra.mxu0 %v103
    %1486 = vmatpush.msra.mxu0 %v101
    %1487 = vmatmul.f32.gmra.mxu0 %v1449
    %v1488 = vpop.f32.mrf.mxu0
    %v1489 = vadd.f32 0.0, %v1488
    %1490 = vdwg.mxu0
    %v1493 = vrot.slane %v1489, 6
    %v1494 = vsel %vm164, %v1469, %v1493
    %v1496 = vadd.f32 %v1447, %v1494
    %v1497 = vmul.f32 %v1496, %v172
    %v1498 = vtanh.pop %v1497
    %v1499 = vmul.f32 %v1498, %v172
    %v1500 = vadd.f32 %v1499, %v181
    %v1501 = vmul.f32 %v1500, %v1433
    %v1503 = vrot.slane %v1500, 2
    %v1505 = vmul.f32 %v1500, %v1503
    %1507 = vrot.lane.b32.xlu0 %v1505, 64
    %v1508 = vpop.permute.xlu0 %1507
    %v1510 = vadd.f32 %v1501, %v1508
    %v1511 = vtanh.pop %v1510
    %1512 = vrot.lane.b32.xlu0 %v1500, 64
    %v1513 = vpop.permute.xlu0 %1512
    %v1514 = vrot.slane %v1513, 2
    %1517 = vrot.lane.b32.xlu0 %v1511, 64
    %v1518 = vpop.permute.xlu0 %1517
    %v1520 = vmul.f32 %v1514, %v1518
    %s1521 = scalar_lea.vmem [#allocation3], 14
    %1522 = vst.msk [vmem:[%s1521] sm:$0x3] %vm204, %v1520
    %v1523 = vld [vmem:[#allocation3] sm:$0x3]
    %v1524 = vld [vmem:[#allocation3 + $0x2] sm:$0x3]
    %v1525 = vld [vmem:[#allocation3 + $0x4] sm:$0x3]
    %v1526 = vld [vmem:[#allocation3 + $0x6] sm:$0x3]
    %v1527 = vld [vmem:[#allocation3 + $0x8] sm:$0x3]
    %v1528 = vld [vmem:[#allocation3 + $0xa] sm:$0x3]
    %v1529 = vld [vmem:[#allocation3 + $0xc] sm:$0x3]
    %v1530 = vld [vmem:[#allocation3 + $0xe] sm:$0x3]
    %v1531 = vld [vmem:[#allocation9] sm:$0xff]
    %v1532 = vld [vmem:[#allocation9 + $0x8] sm:$0xff]
    %v1533 = vld [vmem:[#allocation9 + $0x10] sm:$0xff]
    %v1534 = vld [vmem:[#allocation9 + $0x18] sm:$0xff]
    %v1535 = vld [vmem:[#allocation9 + $0x20] sm:$0xff]
    %v1536 = vld [vmem:[#allocation9 + $0x28] sm:$0xff]
    %v1537 = vld [vmem:[#allocation9 + $0x30] sm:$0xff]
    %v1538 = vld [vmem:[#allocation9 + $0x38] sm:$0xff]
    %v1539 = vld [vmem:[%s6] sm:$0x1]
    %v1541 = vperm.slane %v1539, 0
    %1550 = vst [vmem:[#allocation1] ss:$4 sm:$0xff] %v1523
    %s1551 = scalar_lea.vmem [#allocation1], 1
    %1552 = vst [vmem:[%s1551] ss:$4 sm:$0xff] %v1524
    %s1553 = scalar_lea.vmem [#allocation1], 2
    %1554 = vst [vmem:[%s1553] ss:$4 sm:$0xff] %v1525
    %s1555 = scalar_lea.vmem [#allocation1], 3
    %1556 = vst [vmem:[%s1555] ss:$4 sm:$0xff] %v1526
    %s1557 = scalar_lea.vmem [#allocation1], 32
    %1558 = vst [vmem:[%s1557] ss:$4 sm:$0xff] %v1527
    %s1559 = scalar_lea.vmem [#allocation1], 33
    %1560 = vst [vmem:[%s1559] ss:$4 sm:$0xff] %v1528
    %s1561 = scalar_lea.vmem [#allocation1], 34
    %1562 = vst [vmem:[%s1561] ss:$4 sm:$0xff] %v1529
    %s1563 = scalar_lea.vmem [#allocation1], 35
    %1564 = vst [vmem:[%s1563] ss:$4 sm:$0xff] %v1530
    %v1565 = vld.sshfl [vmem:[#allocation1] sm:$0xff pattern:$0x73625140]
    %v1566 = vld.sshfl [vmem:[#allocation1 + $0x20] sm:$0xff pattern:$0x73625140]
    %1567 = vst [vmem:[#allocation1] ss:$4 sm:$0xff] %v1541
    %s1568 = scalar_lea.vmem [#allocation1], 1
    %1569 = vst [vmem:[%s1568] ss:$4 sm:$0xff] %v1541
    %s1570 = scalar_lea.vmem [#allocation1], 2
    %1571 = vst [vmem:[%s1570] ss:$4 sm:$0xff] %v1541
    %s1572 = scalar_lea.vmem [#allocation1], 3
    %1573 = vst [vmem:[%s1572] ss:$4 sm:$0xff] %v1541
    %s1574 = scalar_lea.vmem [#allocation1], 32
    %1575 = vst [vmem:[%s1574] ss:$4 sm:$0xff] %v1541
    %s1576 = scalar_lea.vmem [#allocation1], 33
    %1577 = vst [vmem:[%s1576] ss:$4 sm:$0xff] %v1541
    %s1578 = scalar_lea.vmem [#allocation1], 34
    %1579 = vst [vmem:[%s1578] ss:$4 sm:$0xff] %v1541
    %s1580 = scalar_lea.vmem [#allocation1], 35
    %1581 = vst [vmem:[%s1580] ss:$4 sm:$0xff] %v1541
    %v1582 = vld.sshfl [vmem:[#allocation1] sm:$0xff pattern:$0x73625140]
    %v1583 = vld.sshfl [vmem:[#allocation1 + $0x20] sm:$0xff pattern:$0x73625140]
    %v1586 = vsel %vm117, %v1565, 0
    %v1588 = vsel %vm117, %v1566, 0
    %1590 = vmatpush.msra.mxu0 0.0
    %1591 = vmatpush.msra.mxu0 0.0
    %1592 = vmatpush.msra.mxu0 0.0
    %1593 = vmatpush.msra.mxu0 0.0
    %1594 = vmatpush.msra.mxu0 0.0
    %1595 = vmatpush.msra.mxu0 0.0
    %1596 = vmatpush.msra.mxu0 0.0
    %1597 = vmatpush.msra.mxu0 0.0
    %1598 = vmatpush.msra.mxu0 %v1538
    %1599 = vmatpush.msra.mxu0 %v1537
    %1600 = vmatpush.msra.mxu0 %v1536
    %1601 = vmatpush.msra.mxu0 %v1535
    %1602 = vmatpush.msra.mxu0 %v1534
    %1603 = vmatpush.msra.mxu0 %v1533
    %1604 = vmatpush.msra.mxu0 %v1532
    %1605 = vmatpush.msra.mxu0 %v1531
    %1606 = vmatmul.f32.gmra.mxu0 %v1586
    %v1607 = vpop.f32.mrf.mxu0
    %v1608 = vadd.f32 %v1582, %v1607
    %1609 = vmatmul.f32.gmra.mxu0 %v1588
    %v1610 = vpop.f32.mrf.mxu0
    %v1611 = vadd.f32 %v1583, %v1610
    %1612 = vdwg.mxu0
    %v1615 = vrot.slane %v1608, 2
    %v1616 = vrot.slane %v1608, 4
    %v1617 = vrot.slane %v1608, 6
    %v1618 = vrot.slane %v1611, 2
    %v1619 = vrot.slane %v1611, 4
    %v1620 = vrot.slane %v1611, 6
    %v1627 = vtanh.pop %v1608
    %v1628 = vtanh.pop %v1615
    %v1629 = vtanh.pop %v1616
    %v1630 = vtanh.pop %v1617
    %v1631 = vtanh.pop %v1611
    %v1632 = vtanh.pop %v1618
    %v1633 = vtanh.pop %v1619
    %v1634 = vtanh.pop %v1620
    %v1635 = vld [vmem:[%s7] sm:$0x1]
    %v1637 = vperm.slane %v1635, 0
    %v1639 = vmul.f32 %v1627, %v1637
    %v1640 = vmul.f32 %v1628, %v1637
    %v1641 = vmul.f32 %v1629, %v1637
    %v1642 = vmul.f32 %v1630, %v1637
    %v1643 = vmul.f32 %v1631, %v1637
    %v1644 = vmul.f32 %v1632, %v1637
    %v1645 = vmul.f32 %v1633, %v1637
    %v1646 = vmul.f32 %v1634, %v1637
    %v1647 = vsel %vm204, %v1639, 0.0
    %1648 = vadd.xlane.f32.xlu0 %v1647
    %v1649 = vpop.xlane.xlu0 %1648
    %v1650 = vsel %vm204, %v1640, 0.0
    %1651 = vadd.xlane.f32.xlu0 %v1650
    %v1652 = vpop.xlane.xlu0 %1651
    %v1653 = vsel %vm204, %v1641, 0.0
    %1654 = vadd.xlane.f32.xlu0 %v1653
    %v1655 = vpop.xlane.xlu0 %1654
    %v1656 = vsel %vm204, %v1642, 0.0
    %1657 = vadd.xlane.f32.xlu0 %v1656
    %v1658 = vpop.xlane.xlu0 %1657
    %v1659 = vsel %vm204, %v1643, 0.0
    %1660 = vadd.xlane.f32.xlu0 %v1659
    %v1661 = vpop.xlane.xlu0 %1660
    %v1662 = vsel %vm204, %v1644, 0.0
    %1663 = vadd.xlane.f32.xlu0 %v1662
    %v1664 = vpop.xlane.xlu0 %1663
    %v1665 = vsel %vm204, %v1645, 0.0
    %1666 = vadd.xlane.f32.xlu0 %v1665
    %v1667 = vpop.xlane.xlu0 %1666
    %v1668 = vsel %vm204, %v1646, 0.0
    %1669 = vadd.xlane.f32.xlu0 %v1668
    %v1670 = vpop.xlane.xlu0 %1669
    %v1671 = vsel %vm164, %v1649, -inf
    %v1672 = vsel %vm164, %v1652, -inf
    %v1673 = vsel %vm164, %v1655, -inf
    %v1674 = vsel %vm164, %v1658, -inf
    %v1675 = vsel %vm164, %v1661, -inf
    %v1676 = vmax.f32 %v1671, %v1675
    %v1677 = vsel %vm164, %v1664, -inf
    %v1678 = vmax.f32 %v1672, %v1677
    %v1679 = vsel %vm164, %v1667, -inf
    %v1680 = vmax.f32 %v1673, %v1679
    %v1681 = vsel %vm164, %v1670, -inf
    %v1682 = vmax.f32 %v1674, %v1681
    %v1683 = vmax.f32 %v1676, %v1678
    %v1684 = vmax.f32 %v1680, %v1682
    %v1685 = vmax.f32 %v1683, %v1684
    %v1686 = vsub.f32 %v1649, %v1685
    %v1687 = vsub.f32 %v1652, %v1685
    %v1688 = vsub.f32 %v1655, %v1685
    %v1689 = vsub.f32 %v1658, %v1685
    %v1690 = vsub.f32 %v1661, %v1685
    %v1691 = vsub.f32 %v1664, %v1685
    %v1692 = vsub.f32 %v1667, %v1685
    %v1693 = vsub.f32 %v1670, %v1685
    %v1694 = vmul.f32 %v1686, 1.442695
    %v1695 = vpow.pop %v1694
    %v1696 = vmul.f32 %v1687, 1.442695
    %v1697 = vpow.pop %v1696
    %v1698 = vmul.f32 %v1688, 1.442695
    %v1699 = vpow.pop %v1698
    %v1700 = vmul.f32 %v1689, 1.442695
    %v1701 = vpow.pop %v1700
    %v1702 = vmul.f32 %v1690, 1.442695
    %v1703 = vpow.pop %v1702
    %v1704 = vmul.f32 %v1691, 1.442695
    %v1705 = vpow.pop %v1704
    %v1706 = vmul.f32 %v1692, 1.442695
    %v1707 = vpow.pop %v1706
    %v1708 = vmul.f32 %v1693, 1.442695
    %v1709 = vpow.pop %v1708
    %v1710 = vsel %vm164, %v1695, 0.0
    %v1711 = vsel %vm164, %v1697, 0.0
    %v1712 = vadd.f32 %v1710, %v1711
    %v1713 = vsel %vm164, %v1699, 0.0
    %v1714 = vadd.f32 %v1712, %v1713
    %v1715 = vsel %vm164, %v1701, 0.0
    %v1716 = vadd.f32 %v1714, %v1715
    %v1717 = vsel %vm164, %v1703, 0.0
    %v1718 = vadd.f32 %v1716, %v1717
    %v1719 = vsel %vm164, %v1705, 0.0
    %v1720 = vadd.f32 %v1718, %v1719
    %v1721 = vsel %vm164, %v1707, 0.0
    %v1722 = vadd.f32 %v1720, %v1721
    %v1723 = vsel %vm164, %v1709, 0.0
    %v1724 = vadd.f32 %v1722, %v1723
    %v1725 = vrcp.pop %v1724
    %v1726 = vmul.f32 %v1724, %v1725
    %v1727 = vsub.f32 1.0, %v1726
    %v1728 = vmul.f32 %v1725, %v1727
    %v1729 = vadd.f32 %v1725, %v1728
    %vm1730 = vweird.f32 %v1724
    %vm1731 = vweird.f32 %v1725
    %vm1732 = vmor %vm1730, %vm1731
    %v1733 = vsel %vm1732, %v1725, %v1729
    %v1734 = vand.u32 2147483647, %v1724
    %vm1735 = vcmp.eq.f32.partialorder %v1734, 8.507059e+37
    %v1736 = vand.u32 %v1724, 2147483648
    %v1737 = vor.u32 1.1754944e-38, %v1736
    %v1738 = vsel %vm1735, %v1737, %v1733
    %v1739 = vmul.f32 %v1695, %v1738
    %v1740 = vmul.f32 %v1697, %v1738
    %v1741 = vmul.f32 %v1699, %v1738
    %v1742 = vmul.f32 %v1701, %v1738
    %v1743 = vmul.f32 %v1703, %v1738
    %v1744 = vmul.f32 %v1705, %v1738
    %v1745 = vmul.f32 %v1707, %v1738
    %v1746 = vmul.f32 %v1709, %v1738
    %v1747 = vmul.f32 %v1523, %v1739
    %v1748 = vmul.f32 %v1524, %v1740
    %v1749 = vmul.f32 %v1525, %v1741
    %v1750 = vmul.f32 %v1526, %v1742
    %v1751 = vmul.f32 %v1527, %v1743
    %v1752 = vmul.f32 %v1528, %v1744
    %v1753 = vmul.f32 %v1529, %v1745
    %v1754 = vmul.f32 %v1530, %v1746
    %v1755 = vsel %vm204, %v1747, 0.0
    %v1756 = vsel %vm204, %v1748, 0.0
    %v1757 = vadd.f32 %v1755, %v1756
    %v1758 = vsel %vm204, %v1749, 0.0
    %v1759 = vadd.f32 %v1757, %v1758
    %v1760 = vsel %vm204, %v1750, 0.0
    %v1761 = vadd.f32 %v1759, %v1760
    %v1762 = vsel %vm204, %v1751, 0.0
    %v1763 = vadd.f32 %v1761, %v1762
    %v1764 = vsel %vm204, %v1752, 0.0
    %v1765 = vadd.f32 %v1763, %v1764
    %v1766 = vsel %vm204, %v1753, 0.0
    %v1767 = vadd.f32 %v1765, %v1766
    %v1768 = vsel %vm204, %v1754, 0.0
    %v1769 = vadd.f32 %v1767, %v1768
    %v1770 = vld [vmem:[%s1521] sm:$0x3]
    %1771 = vst.msk [vmem:[%s10] sm:$0x3] %vm204, %v1770
    %s1772 = scalar_lea.vmem %s10, 2
    %1773 = vst.msk [vmem:[%s1772] sm:$0x3] %vm204, %v1769
    // Predicated region
    $region54: #{lstm_model_forward.1} parent=1 // pred_check
      _
    $region55: #{lstm_model_forward.1} parent=1 // pred_check_branch
      %1775 = sbr.rel (0) target = $region57
    $region56: #{lstm_model_forward.1} parent=1 // pred_region
      _
    $region57: #{lstm_model_forward.1} parent=1 // pred_fallthru
      _
    // Predicated region
    $region58: #{lstm_model_forward.1} parent=1 // pred_check
      _
    $region59: #{lstm_model_forward.1} parent=1 // pred_check_branch
      %1777 = sbr.rel (0) target = $region61
    $region60: #{lstm_model_forward.1} parent=1 // pred_region
      _
    $region61: #{lstm_model_forward.1} parent=1 // pred_fallthru
      _
    %1778 = vsyncpa [#allocation6], 1
    %1779 = vsyncpa [#allocation8], 1

</llo_original>
